<compile_context>
chip_gen: v5e
topology: v5e:2x2
jax: 0.10.0
libtpu: 0.0.40
codegen_flags: <defaults>
</compile_context>

<pallas_src>
import functools

import jax
import jax.numpy as jnp
from jax.experimental import pallas as pl
from jax.experimental.pallas import tpu as pltpu


def gap_conv1x1_kernel(x_ref, w_ref, b_ref, o_ref, *, inv_hw):
    # x_ref: [C_in, HW] f32   w_ref: [c_out_blk, C_in] bf16 (native conv layout)
    # b_ref: [c_out_blk, 1] f32   o_ref: [c_out_blk, 1] f32
    x_bf16 = x_ref[...].astype(jnp.bfloat16)                   # VPU cast; MXU gets bf16
    # Fold the mean into the MXU: contract C_in on the MXU (f32 accumulate),
    # then reduce HW on lanes and scale by 1/HW (mean), add bias.
    p = jnp.dot(w_ref[...], x_bf16,
                preferred_element_type=jnp.float32)            # [c_out_blk, HW]
    s = jnp.sum(p, axis=-1, keepdims=True) * inv_hw            # [c_out_blk, 1]
    o_ref[...] = (s + b_ref[...]).astype(o_ref.dtype)          # sublane-dense store


def _cout_splits_for_device():
    # Use both TensorCores on v7x (2 TC/chip) by splitting the independent C_out axis.
    # Single-TC chips (v5e/v6e) keep one grid step (extra steps only add ~0.35us there).
    try:
        kind = jax.devices()[0].device_kind.lower()
    except Exception:
        return 1
    return 2 if ("v7" in kind or "7x" in kind) else 1


def gap_conv1x1(x_nchw, weight, bias, *, n_splits=None):
    """x_nchw: [N, C_in, H, W] f32, weight: [C_out, C_in, 1, 1], bias: [C_out]."""
    N, C, H, W = x_nchw.shape
    C_out = weight.shape[0]
    HW = H * W

    if n_splits is None:
        n_splits = _cout_splits_for_device()
    if C_out % n_splits != 0 or (C_out // n_splits) % 8 != 0:
        n_splits = 1
    c_blk = C_out // n_splits

    x2 = x_nchw.reshape(N, C, HW)         # [N, C_in, HW]   free view, no copy
    # One-time parameter conversion (in a real model done at init): bf16 weight halves
    # the dominant weight DMA and enables a single-pass bf16 MXU contraction.
    w2 = weight.reshape(C_out, C).astype(jnp.bfloat16)   # [C_out, C_in] native layout
    b2 = bias.reshape(C_out, 1).astype(jnp.float32)      # [C_out, 1]

    kernel = functools.partial(gap_conv1x1_kernel, inv_hw=1.0 / HW)

    out = pl.pallas_call(
        kernel,
        out_shape=jax.ShapeDtypeStruct((N, C_out, 1), x_nchw.dtype),
        grid=(N, n_splits),               # N == 1 here; n_splits == 2 only on v7x
        in_specs=[
            pl.BlockSpec((pl.Squeezed(), C, HW), lambda n, s: (n, 0, 0)),
            pl.BlockSpec((c_blk, C), lambda n, s: (s, 0)),
            pl.BlockSpec((c_blk, 1), lambda n, s: (s, 0)),
        ],
        out_specs=pl.BlockSpec((pl.Squeezed(), c_blk, 1), lambda n, s: (n, s, 0)),
        compiler_params=pltpu.CompilerParams(
            dimension_semantics=("parallel", "parallel"),
            vmem_limit_bytes=8 << 20,     # footprint ~3.3 MB; do not reserve 64 MiB
        ),
    )(x2, w2, b2)

    return out.reshape(N, C_out, 1, 1)    # NCHW, spatial 1x1


if __name__ == "__main__":
    # Shapes implied by the module: x [1, 2304, 7, 7], Conv2d(2304 -> 96, 1x1).
    N, C_in, H, W = 1, 2304, 7, 7
    C_out = 96

    key = jax.random.PRNGKey(0)
    kx, kw, kb = jax.random.split(key, 3)
    x = jax.random.normal(kx, (N, C_in, H, W), dtype=jnp.float32)
    # Deterministic synthetic parameters (Conv2d weight [C_out, C_in, 1, 1], bias [C_out]).
    weight = jax.random.normal(kw, (C_out, C_in, 1, 1), dtype=jnp.float32) * 0.02
    bias = jax.random.normal(kb, (C_out,), dtype=jnp.float32) * 0.02

    out = jax.block_until_ready(gap_conv1x1(x, weight, bias))

    # Pure-JAX f32 reference; tolerance loosened for the bf16 MXU contraction.
    ref = (
        jnp.einsum("nc,oc->no", jnp.mean(x, axis=(2, 3)), weight.reshape(C_out, C_in))
        + bias[None, :]
    ).reshape(N, C_out, 1, 1)
    assert out.shape == (N, C_out, 1, 1)
    assert jnp.allclose(out, ref, atol=1e-2, rtol=2e-2), float(jnp.max(jnp.abs(out - ref)))

    print("KERNEL_OK")
</pallas_src>

<mosaic_0001>
module attributes {stable_mosaic.version = 11 : i64} {
  func.func @gap_conv1x1_kernel(%arg0: i32, %arg1: i32, %arg2: memref<1x2304x49xf32, #tpu.memory_space<vmem>>, %arg3: memref<96x2304xbf16, #tpu.memory_space<vmem>>, %arg4: memref<96x1xf32, #tpu.memory_space<vmem>>, %arg5: memref<1x96x1xf32, #tpu.memory_space<vmem>>) attributes {dimension_semantics = [#tpu.dimension_semantics<parallel>, #tpu.dimension_semantics<parallel>], iteration_bounds = array<i64: 1, 1>, scalar_prefetch = 0 : i64, scratch_operands = 0 : i64, tpu.core_type = #tpu.core_type<tc>, window_params = [{transform_indices = @transform_0, window_bounds = array<i64: 1, 2304, 49>}, {transform_indices = @transform_1, window_bounds = array<i64: 96, 2304>}, {transform_indices = @transform_2, window_bounds = array<i64: 96, 1>}, {transform_indices = @transform_3, window_bounds = array<i64: 1, 96, 1>}]} {
    %c0 = arith.constant 0 : index
    %c0_0 = arith.constant 0 : index
    %c0_1 = arith.constant 0 : index
    %0 = vector.load %arg2[%c0, %c0_0, %c0_1] : memref<1x2304x49xf32, #tpu.memory_space<vmem>>, vector<1x2304x49xf32>
    %1 = vector.shape_cast %0 : vector<1x2304x49xf32> to vector<2304x49xf32>
    %2 = arith.truncf %1 : vector<2304x49xf32> to vector<2304x49xbf16>
    %c0_2 = arith.constant 0 : index
    %c0_3 = arith.constant 0 : index
    %3 = vector.load %arg3[%c0_2, %c0_3] : memref<96x2304xbf16, #tpu.memory_space<vmem>>, vector<96x2304xbf16>
    %cst = arith.constant dense<0.000000e+00> : vector<96x49xf32>
    %4 = tpu.matmul %3, %2, %cst {dimension_numbers = #tpu.dot_dimension_numbers<[1], [0], [0], [1], [0, 0, 1, 1], [], []>} : vector<96x2304xbf16>, vector<2304x49xbf16>, vector<96x49xf32> -> vector<96x49xf32>
    %cst_4 = arith.constant dense<0.000000e+00> : vector<96xf32>
    %5 = vector.multi_reduction <add>, %4, %cst_4 [1] : vector<96x49xf32> to vector<96xf32>
    %6 = vector.shape_cast %5 : vector<96xf32> to vector<96x1xf32>
    %cst_5 = arith.constant 0.0204081628 : f32
    %7 = vector.broadcast %cst_5 : f32 to vector<96x1xf32>
    %8 = arith.mulf %6, %7 : vector<96x1xf32>
    %c0_6 = arith.constant 0 : index
    %c0_7 = arith.constant 0 : index
    %9 = vector.load %arg4[%c0_6, %c0_7] : memref<96x1xf32, #tpu.memory_space<vmem>>, vector<96x1xf32>
    %10 = arith.addf %8, %9 : vector<96x1xf32>
    %c0_8 = arith.constant 0 : index
    %c0_9 = arith.constant 0 : index
    %c0_10 = arith.constant 0 : index
    %11 = vector.load %arg5[%c0_8, %c0_9, %c0_10] : memref<1x96x1xf32, #tpu.memory_space<vmem>>, vector<1x96x1xf32>
    %12 = vector.shape_cast %11 : vector<1x96x1xf32> to vector<96x1xf32>
    %13 = vector.shape_cast %10 : vector<96x1xf32> to vector<1x96x1xf32>
    tpu.vector_store %arg5[%c0_8, %c0_9, %c0_10], %13 {strides = array<i32>} : memref<1x96x1xf32, #tpu.memory_space<vmem>>, vector<1x96x1xf32>,
    return
  }
  func.func @transform_0(%arg0: i32, %arg1: i32) -> (i32, i32, i32) {
    %c0_i32 = arith.constant 0 : i32
    %c0_i32_0 = arith.constant 0 : i32
    %c0_i32_1 = arith.constant 0 : i32
    return %arg0, %c0_i32, %c0_i32_0 : i32, i32, i32
  }
  func.func @transform_1(%arg0: i32, %arg1: i32) -> (i32, i32) {
    %c0_i32 = arith.constant 0 : i32
    %c0_i32_0 = arith.constant 0 : i32
    return %arg1, %c0_i32 : i32, i32
  }
  func.func @transform_2(%arg0: i32, %arg1: i32) -> (i32, i32) {
    %c0_i32 = arith.constant 0 : i32
    %c0_i32_0 = arith.constant 0 : i32
    return %arg1, %c0_i32 : i32, i32
  }
  func.func @transform_3(%arg0: i32, %arg1: i32) -> (i32, i32, i32) {
    %c0_i32 = arith.constant 0 : i32
    %c0_i32_0 = arith.constant 0 : i32
    return %arg0, %arg1, %c0_i32 : i32, i32, i32
  }
}

</mosaic_0001>

<llo_original>
// kernel: tpu_custom_call.1
$region0: #{tpu_custom_call.1}
  #allocation0 [shape = 'u32[]', space=smem, size = 0x4, offset = 0x4, fixed_abs, tag = 'smem constant byte address 0x4 - core index']
  #allocation1 [shape = 'u32[72,128]{1,0:T(1,128)}', space=vmem, size = 0x9000, scoped, tag = 'internal scratch']
  %s0 = inlined_call_operand.vmem [shape: f32[1,2304,49], index: 0, kind: input, shape index: {}]
  %s1 = inlined_call_operand.vmem [shape: bf16[96,2304], index: 1, kind: input, shape index: {}]
  %s2 = inlined_call_operand.vmem [shape: f32[96,1], index: 2, kind: input, shape index: {}]
  %s3 = inlined_call_operand.vmem [shape: f32[1,96,1], index: 3, kind: output, shape index: {}]
  %s4 = sld [smem:[#allocation0]]
  $region22: #{tpu_custom_call.1} parent=0
    _
  %s6 = ssub.s32 1, %s4
  %s7 = scalar_select 0, %s6, %s4
  // Predicated region
  $region2: #{tpu_custom_call.1} parent=0 // pred_check
    _
  $region3: #{tpu_custom_call.1} parent=0 // pred_check_branch
    %9 = sbr.rel (0) target = $region5
  $region4: #{tpu_custom_call.1} parent=0 // pred_region
    _
  $region5: #{tpu_custom_call.1} parent=0 // pred_fallthru
    _
  // Predicated region
  $region6: #{tpu_custom_call.1} parent=0 // pred_check
    _
  $region7: #{tpu_custom_call.1} parent=0 // pred_check_branch
    %11 = sbr.rel (0) target = $region9
  $region8: #{tpu_custom_call.1} parent=0 // pred_region
    _
  $region9: #{tpu_custom_call.1} parent=0 // pred_fallthru
    _
  // Predicated region
  $region10: #{tpu_custom_call.1} parent=0 // pred_check
    _
  $region11: #{tpu_custom_call.1} parent=0 // pred_check_branch
    %13 = sbr.rel (0) target = $region13
  $region12: #{tpu_custom_call.1} parent=0 // pred_region
    _
  $region13: #{tpu_custom_call.1} parent=0 // pred_fallthru
    _
  %v14 = vld [vmem:[%s0] sm:$0xff]
  %v15 = vld [vmem:[%s0 + $0x8] sm:$0xff]
  %v16 = vld [vmem:[%s0 + $0x10] sm:$0xff]
  %v17 = vld [vmem:[%s0 + $0x18] sm:$0xff]
  %v18 = vld [vmem:[%s0 + $0x20] sm:$0xff]
  %v19 = vld [vmem:[%s0 + $0x28] sm:$0xff]
  %v20 = vld [vmem:[%s0 + $0x30] sm:$0xff]
  %v21 = vld [vmem:[%s0 + $0x38] sm:$0xff]
  %v22 = vld [vmem:[%s0 + $0x40] sm:$0xff]
  %v23 = vld [vmem:[%s0 + $0x48] sm:$0xff]
  %v24 = vld [vmem:[%s0 + $0x50] sm:$0xff]
  %v25 = vld [vmem:[%s0 + $0x58] sm:$0xff]
  %v26 = vld [vmem:[%s0 + $0x60] sm:$0xff]
  %v27 = vld [vmem:[%s0 + $0x68] sm:$0xff]
  %v28 = vld [vmem:[%s0 + $0x70] sm:$0xff]
  %v29 = vld [vmem:[%s0 + $0x78] sm:$0xff]
  %v30 = vld [vmem:[%s0 + $0x80] sm:$0xff]
  %v31 = vld [vmem:[%s0 + $0x88] sm:$0xff]
  %v32 = vld [vmem:[%s0 + $0x90] sm:$0xff]
  %v33 = vld [vmem:[%s0 + $0x98] sm:$0xff]
  %v34 = vld [vmem:[%s0 + $0xa0] sm:$0xff]
  %v35 = vld [vmem:[%s0 + $0xa8] sm:$0xff]
  %v36 = vld [vmem:[%s0 + $0xb0] sm:$0xff]
  %v37 = vld [vmem:[%s0 + $0xb8] sm:$0xff]
  %v38 = vld [vmem:[%s0 + $0xc0] sm:$0xff]
  %v39 = vld [vmem:[%s0 + $0xc8] sm:$0xff]
  %v40 = vld [vmem:[%s0 + $0xd0] sm:$0xff]
  %v41 = vld [vmem:[%s0 + $0xd8] sm:$0xff]
  %v42 = vld [vmem:[%s0 + $0xe0] sm:$0xff]
  %v43 = vld [vmem:[%s0 + $0xe8] sm:$0xff]
  %v44 = vld [vmem:[%s0 + $0xf0] sm:$0xff]
  %v45 = vld [vmem:[%s0 + $0xf8] sm:$0xff]
  %v46 = vld [vmem:[%s0 + $0x100] sm:$0xff]
  %v47 = vld [vmem:[%s0 + $0x108] sm:$0xff]
  %v48 = vld [vmem:[%s0 + $0x110] sm:$0xff]
  %v49 = vld [vmem:[%s0 + $0x118] sm:$0xff]
  %v50 = vld [vmem:[%s0 + $0x120] sm:$0xff]
  %v51 = vld [vmem:[%s0 + $0x128] sm:$0xff]
  %v52 = vld [vmem:[%s0 + $0x130] sm:$0xff]
  %v53 = vld [vmem:[%s0 + $0x138] sm:$0xff]
  %v54 = vld [vmem:[%s0 + $0x140] sm:$0xff]
  %v55 = vld [vmem:[%s0 + $0x148] sm:$0xff]
  %v56 = vld [vmem:[%s0 + $0x150] sm:$0xff]
  %v57 = vld [vmem:[%s0 + $0x158] sm:$0xff]
  %v58 = vld [vmem:[%s0 + $0x160] sm:$0xff]
  %v59 = vld [vmem:[%s0 + $0x168] sm:$0xff]
  %v60 = vld [vmem:[%s0 + $0x170] sm:$0xff]
  %v61 = vld [vmem:[%s0 + $0x178] sm:$0xff]
  %v62 = vld [vmem:[%s0 + $0x180] sm:$0xff]
  %v63 = vld [vmem:[%s0 + $0x188] sm:$0xff]
  %v64 = vld [vmem:[%s0 + $0x190] sm:$0xff]
  %v65 = vld [vmem:[%s0 + $0x198] sm:$0xff]
  %v66 = vld [vmem:[%s0 + $0x1a0] sm:$0xff]
  %v67 = vld [vmem:[%s0 + $0x1a8] sm:$0xff]
  %v68 = vld [vmem:[%s0 + $0x1b0] sm:$0xff]
  %v69 = vld [vmem:[%s0 + $0x1b8] sm:$0xff]
  %v70 = vld [vmem:[%s0 + $0x1c0] sm:$0xff]
  %v71 = vld [vmem:[%s0 + $0x1c8] sm:$0xff]
  %v72 = vld [vmem:[%s0 + $0x1d0] sm:$0xff]
  %v73 = vld [vmem:[%s0 + $0x1d8] sm:$0xff]
  %v74 = vld [vmem:[%s0 + $0x1e0] sm:$0xff]
  %v75 = vld [vmem:[%s0 + $0x1e8] sm:$0xff]
  %v76 = vld [vmem:[%s0 + $0x1f0] sm:$0xff]
  %v77 = vld [vmem:[%s0 + $0x1f8] sm:$0xff]
  %v78 = vld [vmem:[%s0 + $0x200] sm:$0xff]
  %v79 = vld [vmem:[%s0 + $0x208] sm:$0xff]
  %v80 = vld [vmem:[%s0 + $0x210] sm:$0xff]
  %v81 = vld [vmem:[%s0 + $0x218] sm:$0xff]
  %v82 = vld [vmem:[%s0 + $0x220] sm:$0xff]
  %v83 = vld [vmem:[%s0 + $0x228] sm:$0xff]
  %v84 = vld [vmem:[%s0 + $0x230] sm:$0xff]
  %v85 = vld [vmem:[%s0 + $0x238] sm:$0xff]
  %v86 = vld [vmem:[%s0 + $0x240] sm:$0xff]
  %v87 = vld [vmem:[%s0 + $0x248] sm:$0xff]
  %v88 = vld [vmem:[%s0 + $0x250] sm:$0xff]
  %v89 = vld [vmem:[%s0 + $0x258] sm:$0xff]
  %v90 = vld [vmem:[%s0 + $0x260] sm:$0xff]
  %v91 = vld [vmem:[%s0 + $0x268] sm:$0xff]
  %v92 = vld [vmem:[%s0 + $0x270] sm:$0xff]
  %v93 = vld [vmem:[%s0 + $0x278] sm:$0xff]
  %v94 = vld [vmem:[%s0 + $0x280] sm:$0xff]
  %v95 = vld [vmem:[%s0 + $0x288] sm:$0xff]
  %v96 = vld [vmem:[%s0 + $0x290] sm:$0xff]
  %v97 = vld [vmem:[%s0 + $0x298] sm:$0xff]
  %v98 = vld [vmem:[%s0 + $0x2a0] sm:$0xff]
  %v99 = vld [vmem:[%s0 + $0x2a8] sm:$0xff]
  %v100 = vld [vmem:[%s0 + $0x2b0] sm:$0xff]
  %v101 = vld [vmem:[%s0 + $0x2b8] sm:$0xff]
  %v102 = vld [vmem:[%s0 + $0x2c0] sm:$0xff]
  %v103 = vld [vmem:[%s0 + $0x2c8] sm:$0xff]
  %v104 = vld [vmem:[%s0 + $0x2d0] sm:$0xff]
  %v105 = vld [vmem:[%s0 + $0x2d8] sm:$0xff]
  %v106 = vld [vmem:[%s0 + $0x2e0] sm:$0xff]
  %v107 = vld [vmem:[%s0 + $0x2e8] sm:$0xff]
  %v108 = vld [vmem:[%s0 + $0x2f0] sm:$0xff]
  %v109 = vld [vmem:[%s0 + $0x2f8] sm:$0xff]
  %v110 = vld [vmem:[%s0 + $0x300] sm:$0xff]
  %v111 = vld [vmem:[%s0 + $0x308] sm:$0xff]
  %v112 = vld [vmem:[%s0 + $0x310] sm:$0xff]
  %v113 = vld [vmem:[%s0 + $0x318] sm:$0xff]
  %v114 = vld [vmem:[%s0 + $0x320] sm:$0xff]
  %v115 = vld [vmem:[%s0 + $0x328] sm:$0xff]
  %v116 = vld [vmem:[%s0 + $0x330] sm:$0xff]
  %v117 = vld [vmem:[%s0 + $0x338] sm:$0xff]
  %v118 = vld [vmem:[%s0 + $0x340] sm:$0xff]
  %v119 = vld [vmem:[%s0 + $0x348] sm:$0xff]
  %v120 = vld [vmem:[%s0 + $0x350] sm:$0xff]
  %v121 = vld [vmem:[%s0 + $0x358] sm:$0xff]
  %v122 = vld [vmem:[%s0 + $0x360] sm:$0xff]
  %v123 = vld [vmem:[%s0 + $0x368] sm:$0xff]
  %v124 = vld [vmem:[%s0 + $0x370] sm:$0xff]
  %v125 = vld [vmem:[%s0 + $0x378] sm:$0xff]
  %v126 = vld [vmem:[%s0 + $0x380] sm:$0xff]
  %v127 = vld [vmem:[%s0 + $0x388] sm:$0xff]
  %v128 = vld [vmem:[%s0 + $0x390] sm:$0xff]
  %v129 = vld [vmem:[%s0 + $0x398] sm:$0xff]
  %v130 = vld [vmem:[%s0 + $0x3a0] sm:$0xff]
  %v131 = vld [vmem:[%s0 + $0x3a8] sm:$0xff]
  %v132 = vld [vmem:[%s0 + $0x3b0] sm:$0xff]
  %v133 = vld [vmem:[%s0 + $0x3b8] sm:$0xff]
  %v134 = vld [vmem:[%s0 + $0x3c0] sm:$0xff]
  %v135 = vld [vmem:[%s0 + $0x3c8] sm:$0xff]
  %v136 = vld [vmem:[%s0 + $0x3d0] sm:$0xff]
  %v137 = vld [vmem:[%s0 + $0x3d8] sm:$0xff]
  %v138 = vld [vmem:[%s0 + $0x3e0] sm:$0xff]
  %v139 = vld [vmem:[%s0 + $0x3e8] sm:$0xff]
  %v140 = vld [vmem:[%s0 + $0x3f0] sm:$0xff]
  %v141 = vld [vmem:[%s0 + $0x3f8] sm:$0xff]
  %v142 = vld [vmem:[%s0 + $0x400] sm:$0xff]
  %v143 = vld [vmem:[%s0 + $0x408] sm:$0xff]
  %v144 = vld [vmem:[%s0 + $0x410] sm:$0xff]
  %v145 = vld [vmem:[%s0 + $0x418] sm:$0xff]
  %v146 = vld [vmem:[%s0 + $0x420] sm:$0xff]
  %v147 = vld [vmem:[%s0 + $0x428] sm:$0xff]
  %v148 = vld [vmem:[%s0 + $0x430] sm:$0xff]
  %v149 = vld [vmem:[%s0 + $0x438] sm:$0xff]
  %v150 = vld [vmem:[%s0 + $0x440] sm:$0xff]
  %v151 = vld [vmem:[%s0 + $0x448] sm:$0xff]
  %v152 = vld [vmem:[%s0 + $0x450] sm:$0xff]
  %v153 = vld [vmem:[%s0 + $0x458] sm:$0xff]
  %v154 = vld [vmem:[%s0 + $0x460] sm:$0xff]
  %v155 = vld [vmem:[%s0 + $0x468] sm:$0xff]
  %v156 = vld [vmem:[%s0 + $0x470] sm:$0xff]
  %v157 = vld [vmem:[%s0 + $0x478] sm:$0xff]
  %v158 = vld [vmem:[%s0 + $0x480] sm:$0xff]
  %v159 = vld [vmem:[%s0 + $0x488] sm:$0xff]
  %v160 = vld [vmem:[%s0 + $0x490] sm:$0xff]
  %v161 = vld [vmem:[%s0 + $0x498] sm:$0xff]
  %v162 = vld [vmem:[%s0 + $0x4a0] sm:$0xff]
  %v163 = vld [vmem:[%s0 + $0x4a8] sm:$0xff]
  %v164 = vld [vmem:[%s0 + $0x4b0] sm:$0xff]
  %v165 = vld [vmem:[%s0 + $0x4b8] sm:$0xff]
  %v166 = vld [vmem:[%s0 + $0x4c0] sm:$0xff]
  %v167 = vld [vmem:[%s0 + $0x4c8] sm:$0xff]
  %v168 = vld [vmem:[%s0 + $0x4d0] sm:$0xff]
  %v169 = vld [vmem:[%s0 + $0x4d8] sm:$0xff]
  %v170 = vld [vmem:[%s0 + $0x4e0] sm:$0xff]
  %v171 = vld [vmem:[%s0 + $0x4e8] sm:$0xff]
  %v172 = vld [vmem:[%s0 + $0x4f0] sm:$0xff]
  %v173 = vld [vmem:[%s0 + $0x4f8] sm:$0xff]
  %v174 = vld [vmem:[%s0 + $0x500] sm:$0xff]
  %v175 = vld [vmem:[%s0 + $0x508] sm:$0xff]
  %v176 = vld [vmem:[%s0 + $0x510] sm:$0xff]
  %v177 = vld [vmem:[%s0 + $0x518] sm:$0xff]
  %v178 = vld [vmem:[%s0 + $0x520] sm:$0xff]
  %v179 = vld [vmem:[%s0 + $0x528] sm:$0xff]
  %v180 = vld [vmem:[%s0 + $0x530] sm:$0xff]
  %v181 = vld [vmem:[%s0 + $0x538] sm:$0xff]
  %v182 = vld [vmem:[%s0 + $0x540] sm:$0xff]
  %v183 = vld [vmem:[%s0 + $0x548] sm:$0xff]
  %v184 = vld [vmem:[%s0 + $0x550] sm:$0xff]
  %v185 = vld [vmem:[%s0 + $0x558] sm:$0xff]
  %v186 = vld [vmem:[%s0 + $0x560] sm:$0xff]
  %v187 = vld [vmem:[%s0 + $0x568] sm:$0xff]
  %v188 = vld [vmem:[%s0 + $0x570] sm:$0xff]
  %v189 = vld [vmem:[%s0 + $0x578] sm:$0xff]
  %v190 = vld [vmem:[%s0 + $0x580] sm:$0xff]
  %v191 = vld [vmem:[%s0 + $0x588] sm:$0xff]
  %v192 = vld [vmem:[%s0 + $0x590] sm:$0xff]
  %v193 = vld [vmem:[%s0 + $0x598] sm:$0xff]
  %v194 = vld [vmem:[%s0 + $0x5a0] sm:$0xff]
  %v195 = vld [vmem:[%s0 + $0x5a8] sm:$0xff]
  %v196 = vld [vmem:[%s0 + $0x5b0] sm:$0xff]
  %v197 = vld [vmem:[%s0 + $0x5b8] sm:$0xff]
  %v198 = vld [vmem:[%s0 + $0x5c0] sm:$0xff]
  %v199 = vld [vmem:[%s0 + $0x5c8] sm:$0xff]
  %v200 = vld [vmem:[%s0 + $0x5d0] sm:$0xff]
  %v201 = vld [vmem:[%s0 + $0x5d8] sm:$0xff]
  %v202 = vld [vmem:[%s0 + $0x5e0] sm:$0xff]
  %v203 = vld [vmem:[%s0 + $0x5e8] sm:$0xff]
  %v204 = vld [vmem:[%s0 + $0x5f0] sm:$0xff]
  %v205 = vld [vmem:[%s0 + $0x5f8] sm:$0xff]
  %v206 = vld [vmem:[%s0 + $0x600] sm:$0xff]
  %v207 = vld [vmem:[%s0 + $0x608] sm:$0xff]
  %v208 = vld [vmem:[%s0 + $0x610] sm:$0xff]
  %v209 = vld [vmem:[%s0 + $0x618] sm:$0xff]
  %v210 = vld [vmem:[%s0 + $0x620] sm:$0xff]
  %v211 = vld [vmem:[%s0 + $0x628] sm:$0xff]
  %v212 = vld [vmem:[%s0 + $0x630] sm:$0xff]
  %v213 = vld [vmem:[%s0 + $0x638] sm:$0xff]
  %v214 = vld [vmem:[%s0 + $0x640] sm:$0xff]
  %v215 = vld [vmem:[%s0 + $0x648] sm:$0xff]
  %v216 = vld [vmem:[%s0 + $0x650] sm:$0xff]
  %v217 = vld [vmem:[%s0 + $0x658] sm:$0xff]
  %v218 = vld [vmem:[%s0 + $0x660] sm:$0xff]
  %v219 = vld [vmem:[%s0 + $0x668] sm:$0xff]
  %v220 = vld [vmem:[%s0 + $0x670] sm:$0xff]
  %v221 = vld [vmem:[%s0 + $0x678] sm:$0xff]
  %v222 = vld [vmem:[%s0 + $0x680] sm:$0xff]
  %v223 = vld [vmem:[%s0 + $0x688] sm:$0xff]
  %v224 = vld [vmem:[%s0 + $0x690] sm:$0xff]
  %v225 = vld [vmem:[%s0 + $0x698] sm:$0xff]
  %v226 = vld [vmem:[%s0 + $0x6a0] sm:$0xff]
  %v227 = vld [vmem:[%s0 + $0x6a8] sm:$0xff]
  %v228 = vld [vmem:[%s0 + $0x6b0] sm:$0xff]
  %v229 = vld [vmem:[%s0 + $0x6b8] sm:$0xff]
  %v230 = vld [vmem:[%s0 + $0x6c0] sm:$0xff]
  %v231 = vld [vmem:[%s0 + $0x6c8] sm:$0xff]
  %v232 = vld [vmem:[%s0 + $0x6d0] sm:$0xff]
  %v233 = vld [vmem:[%s0 + $0x6d8] sm:$0xff]
  %v234 = vld [vmem:[%s0 + $0x6e0] sm:$0xff]
  %v235 = vld [vmem:[%s0 + $0x6e8] sm:$0xff]
  %v236 = vld [vmem:[%s0 + $0x6f0] sm:$0xff]
  %v237 = vld [vmem:[%s0 + $0x6f8] sm:$0xff]
  %v238 = vld [vmem:[%s0 + $0x700] sm:$0xff]
  %v239 = vld [vmem:[%s0 + $0x708] sm:$0xff]
  %v240 = vld [vmem:[%s0 + $0x710] sm:$0xff]
  %v241 = vld [vmem:[%s0 + $0x718] sm:$0xff]
  %v242 = vld [vmem:[%s0 + $0x720] sm:$0xff]
  %v243 = vld [vmem:[%s0 + $0x728] sm:$0xff]
  %v244 = vld [vmem:[%s0 + $0x730] sm:$0xff]
  %v245 = vld [vmem:[%s0 + $0x738] sm:$0xff]
  %v246 = vld [vmem:[%s0 + $0x740] sm:$0xff]
  %v247 = vld [vmem:[%s0 + $0x748] sm:$0xff]
  %v248 = vld [vmem:[%s0 + $0x750] sm:$0xff]
  %v249 = vld [vmem:[%s0 + $0x758] sm:$0xff]
  %v250 = vld [vmem:[%s0 + $0x760] sm:$0xff]
  %v251 = vld [vmem:[%s0 + $0x768] sm:$0xff]
  %v252 = vld [vmem:[%s0 + $0x770] sm:$0xff]
  %v253 = vld [vmem:[%s0 + $0x778] sm:$0xff]
  %v254 = vld [vmem:[%s0 + $0x780] sm:$0xff]
  %v255 = vld [vmem:[%s0 + $0x788] sm:$0xff]
  %v256 = vld [vmem:[%s0 + $0x790] sm:$0xff]
  %v257 = vld [vmem:[%s0 + $0x798] sm:$0xff]
  %v258 = vld [vmem:[%s0 + $0x7a0] sm:$0xff]
  %v259 = vld [vmem:[%s0 + $0x7a8] sm:$0xff]
  %v260 = vld [vmem:[%s0 + $0x7b0] sm:$0xff]
  %v261 = vld [vmem:[%s0 + $0x7b8] sm:$0xff]
  %v262 = vld [vmem:[%s0 + $0x7c0] sm:$0xff]
  %v263 = vld [vmem:[%s0 + $0x7c8] sm:$0xff]
  %v264 = vld [vmem:[%s0 + $0x7d0] sm:$0xff]
  %v265 = vld [vmem:[%s0 + $0x7d8] sm:$0xff]
  %v266 = vld [vmem:[%s0 + $0x7e0] sm:$0xff]
  %v267 = vld [vmem:[%s0 + $0x7e8] sm:$0xff]
  %v268 = vld [vmem:[%s0 + $0x7f0] sm:$0xff]
  %v269 = vld [vmem:[%s0 + $0x7f8] sm:$0xff]
  %v270 = vld [vmem:[%s0 + $0x800] sm:$0xff]
  %v271 = vld [vmem:[%s0 + $0x808] sm:$0xff]
  %v272 = vld [vmem:[%s0 + $0x810] sm:$0xff]
  %v273 = vld [vmem:[%s0 + $0x818] sm:$0xff]
  %v274 = vld [vmem:[%s0 + $0x820] sm:$0xff]
  %v275 = vld [vmem:[%s0 + $0x828] sm:$0xff]
  %v276 = vld [vmem:[%s0 + $0x830] sm:$0xff]
  %v277 = vld [vmem:[%s0 + $0x838] sm:$0xff]
  %v278 = vld [vmem:[%s0 + $0x840] sm:$0xff]
  %v279 = vld [vmem:[%s0 + $0x848] sm:$0xff]
  %v280 = vld [vmem:[%s0 + $0x850] sm:$0xff]
  %v281 = vld [vmem:[%s0 + $0x858] sm:$0xff]
  %v282 = vld [vmem:[%s0 + $0x860] sm:$0xff]
  %v283 = vld [vmem:[%s0 + $0x868] sm:$0xff]
  %v284 = vld [vmem:[%s0 + $0x870] sm:$0xff]
  %v285 = vld [vmem:[%s0 + $0x878] sm:$0xff]
  %v286 = vld [vmem:[%s0 + $0x880] sm:$0xff]
  %v287 = vld [vmem:[%s0 + $0x888] sm:$0xff]
  %v288 = vld [vmem:[%s0 + $0x890] sm:$0xff]
  %v289 = vld [vmem:[%s0 + $0x898] sm:$0xff]
  %v290 = vld [vmem:[%s0 + $0x8a0] sm:$0xff]
  %v291 = vld [vmem:[%s0 + $0x8a8] sm:$0xff]
  %v292 = vld [vmem:[%s0 + $0x8b0] sm:$0xff]
  %v293 = vld [vmem:[%s0 + $0x8b8] sm:$0xff]
  %v294 = vld [vmem:[%s0 + $0x8c0] sm:$0xff]
  %v295 = vld [vmem:[%s0 + $0x8c8] sm:$0xff]
  %v296 = vld [vmem:[%s0 + $0x8d0] sm:$0xff]
  %v297 = vld [vmem:[%s0 + $0x8d8] sm:$0xff]
  %v298 = vld [vmem:[%s0 + $0x8e0] sm:$0xff]
  %v299 = vld [vmem:[%s0 + $0x8e8] sm:$0xff]
  %v300 = vld [vmem:[%s0 + $0x8f0] sm:$0xff]
  %v301 = vld [vmem:[%s0 + $0x8f8] sm:$0xff]
  %v302 = vpack.c.bf16 %v15, %v14
  %v303 = vpack.c.bf16 %v17, %v16
  %v304 = vpack.c.bf16 %v19, %v18
  %v305 = vpack.c.bf16 %v21, %v20
  %v306 = vpack.c.bf16 %v23, %v22
  %v307 = vpack.c.bf16 %v25, %v24
  %v308 = vpack.c.bf16 %v27, %v26
  %v309 = vpack.c.bf16 %v29, %v28
  %v310 = vpack.c.bf16 %v31, %v30
  %v311 = vpack.c.bf16 %v33, %v32
  %v312 = vpack.c.bf16 %v35, %v34
  %v313 = vpack.c.bf16 %v37, %v36
  %v314 = vpack.c.bf16 %v39, %v38
  %v315 = vpack.c.bf16 %v41, %v40
  %v316 = vpack.c.bf16 %v43, %v42
  %v317 = vpack.c.bf16 %v45, %v44
  %v318 = vpack.c.bf16 %v47, %v46
  %v319 = vpack.c.bf16 %v49, %v48
  %v320 = vpack.c.bf16 %v51, %v50
  %v321 = vpack.c.bf16 %v53, %v52
  %v322 = vpack.c.bf16 %v55, %v54
  %v323 = vpack.c.bf16 %v57, %v56
  %v324 = vpack.c.bf16 %v59, %v58
  %v325 = vpack.c.bf16 %v61, %v60
  %v326 = vpack.c.bf16 %v63, %v62
  %v327 = vpack.c.bf16 %v65, %v64
  %v328 = vpack.c.bf16 %v67, %v66
  %v329 = vpack.c.bf16 %v69, %v68
  %v330 = vpack.c.bf16 %v71, %v70
  %v331 = vpack.c.bf16 %v73, %v72
  %v332 = vpack.c.bf16 %v75, %v74
  %v333 = vpack.c.bf16 %v77, %v76
  %v334 = vpack.c.bf16 %v79, %v78
  %v335 = vpack.c.bf16 %v81, %v80
  %v336 = vpack.c.bf16 %v83, %v82
  %v337 = vpack.c.bf16 %v85, %v84
  %v338 = vpack.c.bf16 %v87, %v86
  %v339 = vpack.c.bf16 %v89, %v88
  %v340 = vpack.c.bf16 %v91, %v90
  %v341 = vpack.c.bf16 %v93, %v92
  %v342 = vpack.c.bf16 %v95, %v94
  %v343 = vpack.c.bf16 %v97, %v96
  %v344 = vpack.c.bf16 %v99, %v98
  %v345 = vpack.c.bf16 %v101, %v100
  %v346 = vpack.c.bf16 %v103, %v102
  %v347 = vpack.c.bf16 %v105, %v104
  %v348 = vpack.c.bf16 %v107, %v106
  %v349 = vpack.c.bf16 %v109, %v108
  %v350 = vpack.c.bf16 %v111, %v110
  %v351 = vpack.c.bf16 %v113, %v112
  %v352 = vpack.c.bf16 %v115, %v114
  %v353 = vpack.c.bf16 %v117, %v116
  %v354 = vpack.c.bf16 %v119, %v118
  %v355 = vpack.c.bf16 %v121, %v120
  %v356 = vpack.c.bf16 %v123, %v122
  %v357 = vpack.c.bf16 %v125, %v124
  %v358 = vpack.c.bf16 %v127, %v126
  %v359 = vpack.c.bf16 %v129, %v128
  %v360 = vpack.c.bf16 %v131, %v130
  %v361 = vpack.c.bf16 %v133, %v132
  %v362 = vpack.c.bf16 %v135, %v134
  %v363 = vpack.c.bf16 %v137, %v136
  %v364 = vpack.c.bf16 %v139, %v138
  %v365 = vpack.c.bf16 %v141, %v140
  %v366 = vpack.c.bf16 %v143, %v142
  %v367 = vpack.c.bf16 %v145, %v144
  %v368 = vpack.c.bf16 %v147, %v146
  %v369 = vpack.c.bf16 %v149, %v148
  %v370 = vpack.c.bf16 %v151, %v150
  %v371 = vpack.c.bf16 %v153, %v152
  %v372 = vpack.c.bf16 %v155, %v154
  %v373 = vpack.c.bf16 %v157, %v156
  %v374 = vpack.c.bf16 %v159, %v158
  %v375 = vpack.c.bf16 %v161, %v160
  %v376 = vpack.c.bf16 %v163, %v162
  %v377 = vpack.c.bf16 %v165, %v164
  %v378 = vpack.c.bf16 %v167, %v166
  %v379 = vpack.c.bf16 %v169, %v168
  %v380 = vpack.c.bf16 %v171, %v170
  %v381 = vpack.c.bf16 %v173, %v172
  %v382 = vpack.c.bf16 %v175, %v174
  %v383 = vpack.c.bf16 %v177, %v176
  %v384 = vpack.c.bf16 %v179, %v178
  %v385 = vpack.c.bf16 %v181, %v180
  %v386 = vpack.c.bf16 %v183, %v182
  %v387 = vpack.c.bf16 %v185, %v184
  %v388 = vpack.c.bf16 %v187, %v186
  %v389 = vpack.c.bf16 %v189, %v188
  %v390 = vpack.c.bf16 %v191, %v190
  %v391 = vpack.c.bf16 %v193, %v192
  %v392 = vpack.c.bf16 %v195, %v194
  %v393 = vpack.c.bf16 %v197, %v196
  %v394 = vpack.c.bf16 %v199, %v198
  %v395 = vpack.c.bf16 %v201, %v200
  %v396 = vpack.c.bf16 %v203, %v202
  %v397 = vpack.c.bf16 %v205, %v204
  %v398 = vpack.c.bf16 %v207, %v206
  %v399 = vpack.c.bf16 %v209, %v208
  %v400 = vpack.c.bf16 %v211, %v210
  %v401 = vpack.c.bf16 %v213, %v212
  %v402 = vpack.c.bf16 %v215, %v214
  %v403 = vpack.c.bf16 %v217, %v216
  %v404 = vpack.c.bf16 %v219, %v218
  %v405 = vpack.c.bf16 %v221, %v220
  %v406 = vpack.c.bf16 %v223, %v222
  %v407 = vpack.c.bf16 %v225, %v224
  %v408 = vpack.c.bf16 %v227, %v226
  %v409 = vpack.c.bf16 %v229, %v228
  %v410 = vpack.c.bf16 %v231, %v230
  %v411 = vpack.c.bf16 %v233, %v232
  %v412 = vpack.c.bf16 %v235, %v234
  %v413 = vpack.c.bf16 %v237, %v236
  %v414 = vpack.c.bf16 %v239, %v238
  %v415 = vpack.c.bf16 %v241, %v240
  %v416 = vpack.c.bf16 %v243, %v242
  %v417 = vpack.c.bf16 %v245, %v244
  %v418 = vpack.c.bf16 %v247, %v246
  %v419 = vpack.c.bf16 %v249, %v248
  %v420 = vpack.c.bf16 %v251, %v250
  %v421 = vpack.c.bf16 %v253, %v252
  %v422 = vpack.c.bf16 %v255, %v254
  %v423 = vpack.c.bf16 %v257, %v256
  %v424 = vpack.c.bf16 %v259, %v258
  %v425 = vpack.c.bf16 %v261, %v260
  %v426 = vpack.c.bf16 %v263, %v262
  %v427 = vpack.c.bf16 %v265, %v264
  %v428 = vpack.c.bf16 %v267, %v266
  %v429 = vpack.c.bf16 %v269, %v268
  %v430 = vpack.c.bf16 %v271, %v270
  %v431 = vpack.c.bf16 %v273, %v272
  %v432 = vpack.c.bf16 %v275, %v274
  %v433 = vpack.c.bf16 %v277, %v276
  %v434 = vpack.c.bf16 %v279, %v278
  %v435 = vpack.c.bf16 %v281, %v280
  %v436 = vpack.c.bf16 %v283, %v282
  %v437 = vpack.c.bf16 %v285, %v284
  %v438 = vpack.c.bf16 %v287, %v286
  %v439 = vpack.c.bf16 %v289, %v288
  %v440 = vpack.c.bf16 %v291, %v290
  %v441 = vpack.c.bf16 %v293, %v292
  %v442 = vpack.c.bf16 %v295, %v294
  %v443 = vpack.c.bf16 %v297, %v296
  %v444 = vpack.c.bf16 %v299, %v298
  %v445 = vpack.c.bf16 %v301, %v300
  %v446 = vld [vmem:[%s1] sm:$0xff]
  %v447 = vld [vmem:[%s1 + $0x8] sm:$0xff]
  %v448 = vld [vmem:[%s1 + $0x10] sm:$0xff]
  %v449 = vld [vmem:[%s1 + $0x18] sm:$0xff]
  %v450 = vld [vmem:[%s1 + $0x20] sm:$0xff]
  %v451 = vld [vmem:[%s1 + $0x28] sm:$0xff]
  %v452 = vld [vmem:[%s1 + $0x30] sm:$0xff]
  %v453 = vld [vmem:[%s1 + $0x38] sm:$0xff]
  %v454 = vld [vmem:[%s1 + $0x40] sm:$0xff]
  %v455 = vld [vmem:[%s1 + $0x48] sm:$0xff]
  %v456 = vld [vmem:[%s1 + $0x50] sm:$0xff]
  %v457 = vld [vmem:[%s1 + $0x58] sm:$0xff]
  %v458 = vld [vmem:[%s1 + $0x60] sm:$0xff]
  %v459 = vld [vmem:[%s1 + $0x68] sm:$0xff]
  %v460 = vld [vmem:[%s1 + $0x70] sm:$0xff]
  %v461 = vld [vmem:[%s1 + $0x78] sm:$0xff]
  %v462 = vld [vmem:[%s1 + $0x80] sm:$0xff]
  %v463 = vld [vmem:[%s1 + $0x88] sm:$0xff]
  %v464 = vld [vmem:[%s1 + $0x90] sm:$0xff]
  %v465 = vld [vmem:[%s1 + $0x98] sm:$0xff]
  %v466 = vld [vmem:[%s1 + $0xa0] sm:$0xff]
  %v467 = vld [vmem:[%s1 + $0xa8] sm:$0xff]
  %v468 = vld [vmem:[%s1 + $0xb0] sm:$0xff]
  %v469 = vld [vmem:[%s1 + $0xb8] sm:$0xff]
  %v470 = vld [vmem:[%s1 + $0xc0] sm:$0xff]
  %v471 = vld [vmem:[%s1 + $0xc8] sm:$0xff]
  %v472 = vld [vmem:[%s1 + $0xd0] sm:$0xff]
  %v473 = vld [vmem:[%s1 + $0xd8] sm:$0xff]
  %v474 = vld [vmem:[%s1 + $0xe0] sm:$0xff]
  %v475 = vld [vmem:[%s1 + $0xe8] sm:$0xff]
  %v476 = vld [vmem:[%s1 + $0xf0] sm:$0xff]
  %v477 = vld [vmem:[%s1 + $0xf8] sm:$0xff]
  %v478 = vld [vmem:[%s1 + $0x100] sm:$0xff]
  %v479 = vld [vmem:[%s1 + $0x108] sm:$0xff]
  %v480 = vld [vmem:[%s1 + $0x110] sm:$0xff]
  %v481 = vld [vmem:[%s1 + $0x118] sm:$0xff]
  %v482 = vld [vmem:[%s1 + $0x120] sm:$0xff]
  %v483 = vld [vmem:[%s1 + $0x128] sm:$0xff]
  %v484 = vld [vmem:[%s1 + $0x130] sm:$0xff]
  %v485 = vld [vmem:[%s1 + $0x138] sm:$0xff]
  %v486 = vld [vmem:[%s1 + $0x140] sm:$0xff]
  %v487 = vld [vmem:[%s1 + $0x148] sm:$0xff]
  %v488 = vld [vmem:[%s1 + $0x150] sm:$0xff]
  %v489 = vld [vmem:[%s1 + $0x158] sm:$0xff]
  %v490 = vld [vmem:[%s1 + $0x160] sm:$0xff]
  %v491 = vld [vmem:[%s1 + $0x168] sm:$0xff]
  %v492 = vld [vmem:[%s1 + $0x170] sm:$0xff]
  %v493 = vld [vmem:[%s1 + $0x178] sm:$0xff]
  %v494 = vld [vmem:[%s1 + $0x180] sm:$0xff]
  %v495 = vld [vmem:[%s1 + $0x188] sm:$0xff]
  %v496 = vld [vmem:[%s1 + $0x190] sm:$0xff]
  %v497 = vld [vmem:[%s1 + $0x198] sm:$0xff]
  %v498 = vld [vmem:[%s1 + $0x1a0] sm:$0xff]
  %v499 = vld [vmem:[%s1 + $0x1a8] sm:$0xff]
  %v500 = vld [vmem:[%s1 + $0x1b0] sm:$0xff]
  %v501 = vld [vmem:[%s1 + $0x1b8] sm:$0xff]
  %v502 = vld [vmem:[%s1 + $0x1c0] sm:$0xff]
  %v503 = vld [vmem:[%s1 + $0x1c8] sm:$0xff]
  %v504 = vld [vmem:[%s1 + $0x1d0] sm:$0xff]
  %v505 = vld [vmem:[%s1 + $0x1d8] sm:$0xff]
  %v506 = vld [vmem:[%s1 + $0x1e0] sm:$0xff]
  %v507 = vld [vmem:[%s1 + $0x1e8] sm:$0xff]
  %v508 = vld [vmem:[%s1 + $0x1f0] sm:$0xff]
  %v509 = vld [vmem:[%s1 + $0x1f8] sm:$0xff]
  %v510 = vld [vmem:[%s1 + $0x200] sm:$0xff]
  %v511 = vld [vmem:[%s1 + $0x208] sm:$0xff]
  %v512 = vld [vmem:[%s1 + $0x210] sm:$0xff]
  %v513 = vld [vmem:[%s1 + $0x218] sm:$0xff]
  %v514 = vld [vmem:[%s1 + $0x220] sm:$0xff]
  %v515 = vld [vmem:[%s1 + $0x228] sm:$0xff]
  %v516 = vld [vmem:[%s1 + $0x230] sm:$0xff]
  %v517 = vld [vmem:[%s1 + $0x238] sm:$0xff]
  %v518 = vld [vmem:[%s1 + $0x240] sm:$0xff]
  %v519 = vld [vmem:[%s1 + $0x248] sm:$0xff]
  %v520 = vld [vmem:[%s1 + $0x250] sm:$0xff]
  %v521 = vld [vmem:[%s1 + $0x258] sm:$0xff]
  %v522 = vld [vmem:[%s1 + $0x260] sm:$0xff]
  %v523 = vld [vmem:[%s1 + $0x268] sm:$0xff]
  %v524 = vld [vmem:[%s1 + $0x270] sm:$0xff]
  %v525 = vld [vmem:[%s1 + $0x278] sm:$0xff]
  %v526 = vld [vmem:[%s1 + $0x280] sm:$0xff]
  %v527 = vld [vmem:[%s1 + $0x288] sm:$0xff]
  %v528 = vld [vmem:[%s1 + $0x290] sm:$0xff]
  %v529 = vld [vmem:[%s1 + $0x298] sm:$0xff]
  %v530 = vld [vmem:[%s1 + $0x2a0] sm:$0xff]
  %v531 = vld [vmem:[%s1 + $0x2a8] sm:$0xff]
  %v532 = vld [vmem:[%s1 + $0x2b0] sm:$0xff]
  %v533 = vld [vmem:[%s1 + $0x2b8] sm:$0xff]
  %v534 = vld [vmem:[%s1 + $0x2c0] sm:$0xff]
  %v535 = vld [vmem:[%s1 + $0x2c8] sm:$0xff]
  %v536 = vld [vmem:[%s1 + $0x2d0] sm:$0xff]
  %v537 = vld [vmem:[%s1 + $0x2d8] sm:$0xff]
  %v538 = vld [vmem:[%s1 + $0x2e0] sm:$0xff]
  %v539 = vld [vmem:[%s1 + $0x2e8] sm:$0xff]
  %v540 = vld [vmem:[%s1 + $0x2f0] sm:$0xff]
  %v541 = vld [vmem:[%s1 + $0x2f8] sm:$0xff]
  %v542 = vld [vmem:[%s1 + $0x300] sm:$0xff]
  %v543 = vld [vmem:[%s1 + $0x308] sm:$0xff]
  %v544 = vld [vmem:[%s1 + $0x310] sm:$0xff]
  %v545 = vld [vmem:[%s1 + $0x318] sm:$0xff]
  %v546 = vld [vmem:[%s1 + $0x320] sm:$0xff]
  %v547 = vld [vmem:[%s1 + $0x328] sm:$0xff]
  %v548 = vld [vmem:[%s1 + $0x330] sm:$0xff]
  %v549 = vld [vmem:[%s1 + $0x338] sm:$0xff]
  %v550 = vld [vmem:[%s1 + $0x340] sm:$0xff]
  %v551 = vld [vmem:[%s1 + $0x348] sm:$0xff]
  %v552 = vld [vmem:[%s1 + $0x350] sm:$0xff]
  %v553 = vld [vmem:[%s1 + $0x358] sm:$0xff]
  %v662 = vunpack.c.l.b16 %v446
  %v663 = vunpack.c.h.b16 %v446
  %v664 = vunpack.c.l.b16 %v447
  %v665 = vunpack.c.h.b16 %v447
  %v666 = vunpack.c.l.b16 %v448
  %v667 = vunpack.c.h.b16 %v448
  %v668 = vunpack.c.l.b16 %v449
  %v669 = vunpack.c.h.b16 %v449
  %v670 = vunpack.c.l.b16 %v450
  %v671 = vunpack.c.h.b16 %v450
  %v672 = vunpack.c.l.b16 %v451
  %v673 = vunpack.c.h.b16 %v451
  %v674 = vunpack.c.l.b16 %v452
  %v675 = vunpack.c.h.b16 %v452
  %v676 = vunpack.c.l.b16 %v453
  %v677 = vunpack.c.h.b16 %v453
  %v678 = vunpack.c.l.b16 %v454
  %v679 = vunpack.c.h.b16 %v454
  %v680 = vunpack.c.l.b16 %v455
  %v681 = vunpack.c.h.b16 %v455
  %v682 = vunpack.c.l.b16 %v456
  %v683 = vunpack.c.h.b16 %v456
  %v684 = vunpack.c.l.b16 %v457
  %v685 = vunpack.c.h.b16 %v457
  %v686 = vunpack.c.l.b16 %v458
  %v687 = vunpack.c.h.b16 %v458
  %v688 = vunpack.c.l.b16 %v459
  %v689 = vunpack.c.h.b16 %v459
  %v690 = vunpack.c.l.b16 %v460
  %v691 = vunpack.c.h.b16 %v460
  %v692 = vunpack.c.l.b16 %v461
  %v693 = vunpack.c.h.b16 %v461
  %v694 = vunpack.c.l.b16 %v462
  %v695 = vunpack.c.h.b16 %v462
  %v696 = vunpack.c.l.b16 %v463
  %v697 = vunpack.c.h.b16 %v463
  %v698 = vunpack.c.l.b16 %v464
  %v699 = vunpack.c.h.b16 %v464
  %v700 = vunpack.c.l.b16 %v465
  %v701 = vunpack.c.h.b16 %v465
  %v702 = vunpack.c.l.b16 %v466
  %v703 = vunpack.c.h.b16 %v466
  %v704 = vunpack.c.l.b16 %v467
  %v705 = vunpack.c.h.b16 %v467
  %v706 = vunpack.c.l.b16 %v468
  %v707 = vunpack.c.h.b16 %v468
  %v708 = vunpack.c.l.b16 %v469
  %v709 = vunpack.c.h.b16 %v469
  %v710 = vunpack.c.l.b16 %v470
  %v711 = vunpack.c.h.b16 %v470
  %v712 = vunpack.c.l.b16 %v471
  %v713 = vunpack.c.h.b16 %v471
  %v714 = vunpack.c.l.b16 %v472
  %v715 = vunpack.c.h.b16 %v472
  %v716 = vunpack.c.l.b16 %v473
  %v717 = vunpack.c.h.b16 %v473
  %v718 = vunpack.c.l.b16 %v474
  %v719 = vunpack.c.h.b16 %v474
  %v720 = vunpack.c.l.b16 %v475
  %v721 = vunpack.c.h.b16 %v475
  %v722 = vunpack.c.l.b16 %v476
  %v723 = vunpack.c.h.b16 %v476
  %v724 = vunpack.c.l.b16 %v477
  %v725 = vunpack.c.h.b16 %v477
  %v726 = vunpack.c.l.b16 %v478
  %v727 = vunpack.c.h.b16 %v478
  %v728 = vunpack.c.l.b16 %v479
  %v729 = vunpack.c.h.b16 %v479
  %v730 = vunpack.c.l.b16 %v480
  %v731 = vunpack.c.h.b16 %v480
  %v732 = vunpack.c.l.b16 %v481
  %v733 = vunpack.c.h.b16 %v481
  %v734 = vunpack.c.l.b16 %v482
  %v735 = vunpack.c.h.b16 %v482
  %v736 = vunpack.c.l.b16 %v483
  %v737 = vunpack.c.h.b16 %v483
  %v738 = vunpack.c.l.b16 %v484
  %v739 = vunpack.c.h.b16 %v484
  %v740 = vunpack.c.l.b16 %v485
  %v741 = vunpack.c.h.b16 %v485
  %v742 = vunpack.c.l.b16 %v486
  %v743 = vunpack.c.h.b16 %v486
  %v744 = vunpack.c.l.b16 %v487
  %v745 = vunpack.c.h.b16 %v487
  %v746 = vunpack.c.l.b16 %v488
  %v747 = vunpack.c.h.b16 %v488
  %v748 = vunpack.c.l.b16 %v489
  %v749 = vunpack.c.h.b16 %v489
  %v750 = vunpack.c.l.b16 %v490
  %v751 = vunpack.c.h.b16 %v490
  %v752 = vunpack.c.l.b16 %v491
  %v753 = vunpack.c.h.b16 %v491
  %v754 = vunpack.c.l.b16 %v492
  %v755 = vunpack.c.h.b16 %v492
  %v756 = vunpack.c.l.b16 %v493
  %v757 = vunpack.c.h.b16 %v493
  %v758 = vunpack.c.l.b16 %v494
  %v759 = vunpack.c.h.b16 %v494
  %v760 = vunpack.c.l.b16 %v495
  %v761 = vunpack.c.h.b16 %v495
  %v762 = vunpack.c.l.b16 %v496
  %v763 = vunpack.c.h.b16 %v496
  %v764 = vunpack.c.l.b16 %v497
  %v765 = vunpack.c.h.b16 %v497
  %v766 = vunpack.c.l.b16 %v498
  %v767 = vunpack.c.h.b16 %v498
  %v768 = vunpack.c.l.b16 %v499
  %v769 = vunpack.c.h.b16 %v499
  %v770 = vunpack.c.l.b16 %v500
  %v771 = vunpack.c.h.b16 %v500
  %v772 = vunpack.c.l.b16 %v501
  %v773 = vunpack.c.h.b16 %v501
  %v774 = vunpack.c.l.b16 %v502
  %v775 = vunpack.c.h.b16 %v502
  %v776 = vunpack.c.l.b16 %v503
  %v777 = vunpack.c.h.b16 %v503
  %v778 = vunpack.c.l.b16 %v504
  %v779 = vunpack.c.h.b16 %v504
  %v780 = vunpack.c.l.b16 %v505
  %v781 = vunpack.c.h.b16 %v505
  %v782 = vunpack.c.l.b16 %v506
  %v783 = vunpack.c.h.b16 %v506
  %v784 = vunpack.c.l.b16 %v507
  %v785 = vunpack.c.h.b16 %v507
  %v786 = vunpack.c.l.b16 %v508
  %v787 = vunpack.c.h.b16 %v508
  %v788 = vunpack.c.l.b16 %v509
  %v789 = vunpack.c.h.b16 %v509
  %v790 = vunpack.c.l.b16 %v510
  %v791 = vunpack.c.h.b16 %v510
  %v792 = vunpack.c.l.b16 %v511
  %v793 = vunpack.c.h.b16 %v511
  %v794 = vunpack.c.l.b16 %v512
  %v795 = vunpack.c.h.b16 %v512
  %v796 = vunpack.c.l.b16 %v513
  %v797 = vunpack.c.h.b16 %v513
  %v798 = vunpack.c.l.b16 %v514
  %v799 = vunpack.c.h.b16 %v514
  %v800 = vunpack.c.l.b16 %v515
  %v801 = vunpack.c.h.b16 %v515
  %v802 = vunpack.c.l.b16 %v516
  %v803 = vunpack.c.h.b16 %v516
  %v804 = vunpack.c.l.b16 %v517
  %v805 = vunpack.c.h.b16 %v517
  %v806 = vunpack.c.l.b16 %v518
  %v807 = vunpack.c.h.b16 %v518
  %v808 = vunpack.c.l.b16 %v519
  %v809 = vunpack.c.h.b16 %v519
  %v810 = vunpack.c.l.b16 %v520
  %v811 = vunpack.c.h.b16 %v520
  %v812 = vunpack.c.l.b16 %v521
  %v813 = vunpack.c.h.b16 %v521
  %v814 = vunpack.c.l.b16 %v522
  %v815 = vunpack.c.h.b16 %v522
  %v816 = vunpack.c.l.b16 %v523
  %v817 = vunpack.c.h.b16 %v523
  %v818 = vunpack.c.l.b16 %v524
  %v819 = vunpack.c.h.b16 %v524
  %v820 = vunpack.c.l.b16 %v525
  %v821 = vunpack.c.h.b16 %v525
  %v822 = vunpack.c.l.b16 %v526
  %v823 = vunpack.c.h.b16 %v526
  %v824 = vunpack.c.l.b16 %v527
  %v825 = vunpack.c.h.b16 %v527
  %v826 = vunpack.c.l.b16 %v528
  %v827 = vunpack.c.h.b16 %v528
  %v828 = vunpack.c.l.b16 %v529
  %v829 = vunpack.c.h.b16 %v529
  %v830 = vunpack.c.l.b16 %v530
  %v831 = vunpack.c.h.b16 %v530
  %v832 = vunpack.c.l.b16 %v531
  %v833 = vunpack.c.h.b16 %v531
  %v834 = vunpack.c.l.b16 %v532
  %v835 = vunpack.c.h.b16 %v532
  %v836 = vunpack.c.l.b16 %v533
  %v837 = vunpack.c.h.b16 %v533
  %v838 = vunpack.c.l.b16 %v534
  %v839 = vunpack.c.h.b16 %v534
  %v840 = vunpack.c.l.b16 %v535
  %v841 = vunpack.c.h.b16 %v535
  %v842 = vunpack.c.l.b16 %v536
  %v843 = vunpack.c.h.b16 %v536
  %v844 = vunpack.c.l.b16 %v537
  %v845 = vunpack.c.h.b16 %v537
  %v846 = vunpack.c.l.b16 %v538
  %v847 = vunpack.c.h.b16 %v538
  %v848 = vunpack.c.l.b16 %v539
  %v849 = vunpack.c.h.b16 %v539
  %v850 = vunpack.c.l.b16 %v540
  %v851 = vunpack.c.h.b16 %v540
  %v852 = vunpack.c.l.b16 %v541
  %v853 = vunpack.c.h.b16 %v541
  %v854 = vunpack.c.l.b16 %v542
  %v855 = vunpack.c.h.b16 %v542
  %v856 = vunpack.c.l.b16 %v543
  %v857 = vunpack.c.h.b16 %v543
  %v858 = vunpack.c.l.b16 %v544
  %v859 = vunpack.c.h.b16 %v544
  %v860 = vunpack.c.l.b16 %v545
  %v861 = vunpack.c.h.b16 %v545
  %v862 = vunpack.c.l.b16 %v546
  %v863 = vunpack.c.h.b16 %v546
  %v864 = vunpack.c.l.b16 %v547
  %v865 = vunpack.c.h.b16 %v547
  %v866 = vunpack.c.l.b16 %v548
  %v867 = vunpack.c.h.b16 %v548
  %v868 = vunpack.c.l.b16 %v549
  %v869 = vunpack.c.h.b16 %v549
  %v870 = vunpack.c.l.b16 %v550
  %v871 = vunpack.c.h.b16 %v550
  %v872 = vunpack.c.l.b16 %v551
  %v873 = vunpack.c.h.b16 %v551
  %v874 = vunpack.c.l.b16 %v552
  %v875 = vunpack.c.h.b16 %v552
  %v876 = vunpack.c.l.b16 %v553
  %v877 = vunpack.c.h.b16 %v553
  %v878 = vpack.c.b16 %v680, %v662
  %v879 = vpack.c.b16 %v681, %v663
  %v880 = vpack.c.b16 %v682, %v664
  %v881 = vpack.c.b16 %v683, %v665
  %v882 = vpack.c.b16 %v684, %v666
  %v883 = vpack.c.b16 %v685, %v667
  %v884 = vpack.c.b16 %v686, %v668
  %v885 = vpack.c.b16 %v687, %v669
  %v886 = vpack.c.b16 %v688, %v670
  %v887 = vpack.c.b16 %v689, %v671
  %v888 = vpack.c.b16 %v690, %v672
  %v889 = vpack.c.b16 %v691, %v673
  %v890 = vpack.c.b16 %v692, %v674
  %v891 = vpack.c.b16 %v693, %v675
  %v892 = vpack.c.b16 %v694, %v676
  %v893 = vpack.c.b16 %v695, %v677
  %v894 = vpack.c.b16 %v696, %v678
  %v895 = vpack.c.b16 %v697, %v679
  %v896 = vpack.c.b16 %v716, %v698
  %v897 = vpack.c.b16 %v717, %v699
  %v898 = vpack.c.b16 %v718, %v700
  %v899 = vpack.c.b16 %v719, %v701
  %v900 = vpack.c.b16 %v720, %v702
  %v901 = vpack.c.b16 %v721, %v703
  %v902 = vpack.c.b16 %v722, %v704
  %v903 = vpack.c.b16 %v723, %v705
  %v904 = vpack.c.b16 %v724, %v706
  %v905 = vpack.c.b16 %v725, %v707
  %v906 = vpack.c.b16 %v726, %v708
  %v907 = vpack.c.b16 %v727, %v709
  %v908 = vpack.c.b16 %v728, %v710
  %v909 = vpack.c.b16 %v729, %v711
  %v910 = vpack.c.b16 %v730, %v712
  %v911 = vpack.c.b16 %v731, %v713
  %v912 = vpack.c.b16 %v732, %v714
  %v913 = vpack.c.b16 %v733, %v715
  %v914 = vpack.c.b16 %v752, %v734
  %v915 = vpack.c.b16 %v753, %v735
  %v916 = vpack.c.b16 %v754, %v736
  %v917 = vpack.c.b16 %v755, %v737
  %v918 = vpack.c.b16 %v756, %v738
  %v919 = vpack.c.b16 %v757, %v739
  %v920 = vpack.c.b16 %v758, %v740
  %v921 = vpack.c.b16 %v759, %v741
  %v922 = vpack.c.b16 %v760, %v742
  %v923 = vpack.c.b16 %v761, %v743
  %v924 = vpack.c.b16 %v762, %v744
  %v925 = vpack.c.b16 %v763, %v745
  %v926 = vpack.c.b16 %v764, %v746
  %v927 = vpack.c.b16 %v765, %v747
  %v928 = vpack.c.b16 %v766, %v748
  %v929 = vpack.c.b16 %v767, %v749
  %v930 = vpack.c.b16 %v768, %v750
  %v931 = vpack.c.b16 %v769, %v751
  %v932 = vpack.c.b16 %v788, %v770
  %v933 = vpack.c.b16 %v789, %v771
  %v934 = vpack.c.b16 %v790, %v772
  %v935 = vpack.c.b16 %v791, %v773
  %v936 = vpack.c.b16 %v792, %v774
  %v937 = vpack.c.b16 %v793, %v775
  %v938 = vpack.c.b16 %v794, %v776
  %v939 = vpack.c.b16 %v795, %v777
  %v940 = vpack.c.b16 %v796, %v778
  %v941 = vpack.c.b16 %v797, %v779
  %v942 = vpack.c.b16 %v798, %v780
  %v943 = vpack.c.b16 %v799, %v781
  %v944 = vpack.c.b16 %v800, %v782
  %v945 = vpack.c.b16 %v801, %v783
  %v946 = vpack.c.b16 %v802, %v784
  %v947 = vpack.c.b16 %v803, %v785
  %v948 = vpack.c.b16 %v804, %v786
  %v949 = vpack.c.b16 %v805, %v787
  %v950 = vpack.c.b16 %v824, %v806
  %v951 = vpack.c.b16 %v825, %v807
  %v952 = vpack.c.b16 %v826, %v808
  %v953 = vpack.c.b16 %v827, %v809
  %v954 = vpack.c.b16 %v828, %v810
  %v955 = vpack.c.b16 %v829, %v811
  %v956 = vpack.c.b16 %v830, %v812
  %v957 = vpack.c.b16 %v831, %v813
  %v958 = vpack.c.b16 %v832, %v814
  %v959 = vpack.c.b16 %v833, %v815
  %v960 = vpack.c.b16 %v834, %v816
  %v961 = vpack.c.b16 %v835, %v817
  %v962 = vpack.c.b16 %v836, %v818
  %v963 = vpack.c.b16 %v837, %v819
  %v964 = vpack.c.b16 %v838, %v820
  %v965 = vpack.c.b16 %v839, %v821
  %v966 = vpack.c.b16 %v840, %v822
  %v967 = vpack.c.b16 %v841, %v823
  %v968 = vpack.c.b16 %v860, %v842
  %v969 = vpack.c.b16 %v861, %v843
  %v970 = vpack.c.b16 %v862, %v844
  %v971 = vpack.c.b16 %v863, %v845
  %v972 = vpack.c.b16 %v864, %v846
  %v973 = vpack.c.b16 %v865, %v847
  %v974 = vpack.c.b16 %v866, %v848
  %v975 = vpack.c.b16 %v867, %v849
  %v976 = vpack.c.b16 %v868, %v850
  %v977 = vpack.c.b16 %v869, %v851
  %v978 = vpack.c.b16 %v870, %v852
  %v979 = vpack.c.b16 %v871, %v853
  %v980 = vpack.c.b16 %v872, %v854
  %v981 = vpack.c.b16 %v873, %v855
  %v982 = vpack.c.b16 %v874, %v856
  %v983 = vpack.c.b16 %v875, %v857
  %v984 = vpack.c.b16 %v876, %v858
  %v985 = vpack.c.b16 %v877, %v859
  %1094 = vmatpush.bf16.msra.mxu0 %v309
  %1095 = vmatpush.bf16.msra.mxu0 %v308
  %1096 = vmatpush.bf16.msra.mxu0 %v307
  %1097 = vmatpush.bf16.msra.mxu0 %v306
  %1098 = vmatpush.bf16.msra.mxu0 %v305
  %1099 = vmatpush.bf16.msra.mxu0 %v304
  %1100 = vmatpush.bf16.msra.mxu0 %v303
  %1101 = vmatpush.bf16.msra.mxu0 %v302
  %1102 = vmatmul.bf16.gmra.mxu0 %v878
  %v1103 = vpop.f32.mrf.mxu0
  %v1104 = vadd.f32 0.0, %v1103
  %v1105 = vpop.f32.mrf.mxu0
  %v1106 = vadd.f32 0.0, %v1105
  %1107 = vmatmul.bf16.gmra.mxu0 %v896
  %v1108 = vpop.f32.mrf.mxu0
  %v1109 = vadd.f32 0.0, %v1108
  %v1110 = vpop.f32.mrf.mxu0
  %v1111 = vadd.f32 0.0, %v1110
  %1112 = vmatmul.bf16.gmra.mxu0 %v914
  %v1113 = vpop.f32.mrf.mxu0
  %v1114 = vadd.f32 0.0, %v1113
  %v1115 = vpop.f32.mrf.mxu0
  %v1116 = vadd.f32 0.0, %v1115
  %1117 = vmatmul.bf16.gmra.mxu0 %v932
  %v1118 = vpop.f32.mrf.mxu0
  %v1119 = vadd.f32 0.0, %v1118
  %v1120 = vpop.f32.mrf.mxu0
  %v1121 = vadd.f32 0.0, %v1120
  %1122 = vmatmul.bf16.gmra.mxu0 %v950
  %v1123 = vpop.f32.mrf.mxu0
  %v1124 = vadd.f32 0.0, %v1123
  %v1125 = vpop.f32.mrf.mxu0
  %v1126 = vadd.f32 0.0, %v1125
  %1127 = vmatmul.bf16.gmra.mxu0 %v968
  %v1128 = vpop.f32.mrf.mxu0
  %v1129 = vadd.f32 0.0, %v1128
  %v1130 = vpop.f32.mrf.mxu0
  %v1131 = vadd.f32 0.0, %v1130
  %1132 = vdwg.mxu0
  %1133 = vmatpush.bf16.msra.mxu0 %v317
  %1134 = vmatpush.bf16.msra.mxu0 %v316
  %1135 = vmatpush.bf16.msra.mxu0 %v315
  %1136 = vmatpush.bf16.msra.mxu0 %v314
  %1137 = vmatpush.bf16.msra.mxu0 %v313
  %1138 = vmatpush.bf16.msra.mxu0 %v312
  %1139 = vmatpush.bf16.msra.mxu0 %v311
  %1140 = vmatpush.bf16.msra.mxu0 %v310
  %1141 = vmatmul.bf16.gmra.mxu0 %v879
  %v1142 = vpop.f32.mrf.mxu0
  %v1143 = vadd.f32 %v1104, %v1142
  %v1144 = vpop.f32.mrf.mxu0
  %v1145 = vadd.f32 %v1106, %v1144
  %1146 = vmatmul.bf16.gmra.mxu0 %v897
  %v1147 = vpop.f32.mrf.mxu0
  %v1148 = vadd.f32 %v1109, %v1147
  %v1149 = vpop.f32.mrf.mxu0
  %v1150 = vadd.f32 %v1111, %v1149
  %1151 = vmatmul.bf16.gmra.mxu0 %v915
  %v1152 = vpop.f32.mrf.mxu0
  %v1153 = vadd.f32 %v1114, %v1152
  %v1154 = vpop.f32.mrf.mxu0
  %v1155 = vadd.f32 %v1116, %v1154
  %1156 = vmatmul.bf16.gmra.mxu0 %v933
  %v1157 = vpop.f32.mrf.mxu0
  %v1158 = vadd.f32 %v1119, %v1157
  %v1159 = vpop.f32.mrf.mxu0
  %v1160 = vadd.f32 %v1121, %v1159
  %1161 = vmatmul.bf16.gmra.mxu0 %v951
  %v1162 = vpop.f32.mrf.mxu0
  %v1163 = vadd.f32 %v1124, %v1162
  %v1164 = vpop.f32.mrf.mxu0
  %v1165 = vadd.f32 %v1126, %v1164
  %1166 = vmatmul.bf16.gmra.mxu0 %v969
  %v1167 = vpop.f32.mrf.mxu0
  %v1168 = vadd.f32 %v1129, %v1167
  %v1169 = vpop.f32.mrf.mxu0
  %v1170 = vadd.f32 %v1131, %v1169
  %1171 = vdwg.mxu0
  %1172 = vmatpush.bf16.msra.mxu0 %v325
  %1173 = vmatpush.bf16.msra.mxu0 %v324
  %1174 = vmatpush.bf16.msra.mxu0 %v323
  %1175 = vmatpush.bf16.msra.mxu0 %v322
  %1176 = vmatpush.bf16.msra.mxu0 %v321
  %1177 = vmatpush.bf16.msra.mxu0 %v320
  %1178 = vmatpush.bf16.msra.mxu0 %v319
  %1179 = vmatpush.bf16.msra.mxu0 %v318
  %1180 = vmatmul.bf16.gmra.mxu0 %v880
  %v1181 = vpop.f32.mrf.mxu0
  %v1182 = vadd.f32 %v1143, %v1181
  %v1183 = vpop.f32.mrf.mxu0
  %v1184 = vadd.f32 %v1145, %v1183
  %1185 = vmatmul.bf16.gmra.mxu0 %v898
  %v1186 = vpop.f32.mrf.mxu0
  %v1187 = vadd.f32 %v1148, %v1186
  %v1188 = vpop.f32.mrf.mxu0
  %v1189 = vadd.f32 %v1150, %v1188
  %1190 = vmatmul.bf16.gmra.mxu0 %v916
  %v1191 = vpop.f32.mrf.mxu0
  %v1192 = vadd.f32 %v1153, %v1191
  %v1193 = vpop.f32.mrf.mxu0
  %v1194 = vadd.f32 %v1155, %v1193
  %1195 = vmatmul.bf16.gmra.mxu0 %v934
  %v1196 = vpop.f32.mrf.mxu0
  %v1197 = vadd.f32 %v1158, %v1196
  %v1198 = vpop.f32.mrf.mxu0
  %v1199 = vadd.f32 %v1160, %v1198
  %1200 = vmatmul.bf16.gmra.mxu0 %v952
  %v1201 = vpop.f32.mrf.mxu0
  %v1202 = vadd.f32 %v1163, %v1201
  %v1203 = vpop.f32.mrf.mxu0
  %v1204 = vadd.f32 %v1165, %v1203
  %1205 = vmatmul.bf16.gmra.mxu0 %v970
  %v1206 = vpop.f32.mrf.mxu0
  %v1207 = vadd.f32 %v1168, %v1206
  %v1208 = vpop.f32.mrf.mxu0
  %v1209 = vadd.f32 %v1170, %v1208
  %1210 = vdwg.mxu0
  %1211 = vmatpush.bf16.msra.mxu0 %v333
  %1212 = vmatpush.bf16.msra.mxu0 %v332
  %1213 = vmatpush.bf16.msra.mxu0 %v331
  %1214 = vmatpush.bf16.msra.mxu0 %v330
  %1215 = vmatpush.bf16.msra.mxu0 %v329
  %1216 = vmatpush.bf16.msra.mxu0 %v328
  %1217 = vmatpush.bf16.msra.mxu0 %v327
  %1218 = vmatpush.bf16.msra.mxu0 %v326
  %1219 = vmatmul.bf16.gmra.mxu0 %v881
  %v1220 = vpop.f32.mrf.mxu0
  %v1221 = vadd.f32 %v1182, %v1220
  %v1222 = vpop.f32.mrf.mxu0
  %v1223 = vadd.f32 %v1184, %v1222
  %1224 = vmatmul.bf16.gmra.mxu0 %v899
  %v1225 = vpop.f32.mrf.mxu0
  %v1226 = vadd.f32 %v1187, %v1225
  %v1227 = vpop.f32.mrf.mxu0
  %v1228 = vadd.f32 %v1189, %v1227
  %1229 = vmatmul.bf16.gmra.mxu0 %v917
  %v1230 = vpop.f32.mrf.mxu0
  %v1231 = vadd.f32 %v1192, %v1230
  %v1232 = vpop.f32.mrf.mxu0
  %v1233 = vadd.f32 %v1194, %v1232
  %1234 = vmatmul.bf16.gmra.mxu0 %v935
  %v1235 = vpop.f32.mrf.mxu0
  %v1236 = vadd.f32 %v1197, %v1235
  %v1237 = vpop.f32.mrf.mxu0
  %v1238 = vadd.f32 %v1199, %v1237
  %1239 = vmatmul.bf16.gmra.mxu0 %v953
  %v1240 = vpop.f32.mrf.mxu0
  %v1241 = vadd.f32 %v1202, %v1240
  %v1242 = vpop.f32.mrf.mxu0
  %v1243 = vadd.f32 %v1204, %v1242
  %1244 = vmatmul.bf16.gmra.mxu0 %v971
  %v1245 = vpop.f32.mrf.mxu0
  %v1246 = vadd.f32 %v1207, %v1245
  %v1247 = vpop.f32.mrf.mxu0
  %v1248 = vadd.f32 %v1209, %v1247
  %1249 = vdwg.mxu0
  %1250 = vmatpush.bf16.msra.mxu0 %v341
  %1251 = vmatpush.bf16.msra.mxu0 %v340
  %1252 = vmatpush.bf16.msra.mxu0 %v339
  %1253 = vmatpush.bf16.msra.mxu0 %v338
  %1254 = vmatpush.bf16.msra.mxu0 %v337
  %1255 = vmatpush.bf16.msra.mxu0 %v336
  %1256 = vmatpush.bf16.msra.mxu0 %v335
  %1257 = vmatpush.bf16.msra.mxu0 %v334
  %1258 = vmatmul.bf16.gmra.mxu0 %v882
  %v1259 = vpop.f32.mrf.mxu0
  %v1260 = vadd.f32 %v1221, %v1259
  %v1261 = vpop.f32.mrf.mxu0
  %v1262 = vadd.f32 %v1223, %v1261
  %1263 = vmatmul.bf16.gmra.mxu0 %v900
  %v1264 = vpop.f32.mrf.mxu0
  %v1265 = vadd.f32 %v1226, %v1264
  %v1266 = vpop.f32.mrf.mxu0
  %v1267 = vadd.f32 %v1228, %v1266
  %1268 = vmatmul.bf16.gmra.mxu0 %v918
  %v1269 = vpop.f32.mrf.mxu0
  %v1270 = vadd.f32 %v1231, %v1269
  %v1271 = vpop.f32.mrf.mxu0
  %v1272 = vadd.f32 %v1233, %v1271
  %1273 = vmatmul.bf16.gmra.mxu0 %v936
  %v1274 = vpop.f32.mrf.mxu0
  %v1275 = vadd.f32 %v1236, %v1274
  %v1276 = vpop.f32.mrf.mxu0
  %v1277 = vadd.f32 %v1238, %v1276
  %1278 = vmatmul.bf16.gmra.mxu0 %v954
  %v1279 = vpop.f32.mrf.mxu0
  %v1280 = vadd.f32 %v1241, %v1279
  %v1281 = vpop.f32.mrf.mxu0
  %v1282 = vadd.f32 %v1243, %v1281
  %1283 = vmatmul.bf16.gmra.mxu0 %v972
  %v1284 = vpop.f32.mrf.mxu0
  %v1285 = vadd.f32 %v1246, %v1284
  %v1286 = vpop.f32.mrf.mxu0
  %v1287 = vadd.f32 %v1248, %v1286
  %1288 = vdwg.mxu0
  %1289 = vmatpush.bf16.msra.mxu0 %v349
  %1290 = vmatpush.bf16.msra.mxu0 %v348
  %1291 = vmatpush.bf16.msra.mxu0 %v347
  %1292 = vmatpush.bf16.msra.mxu0 %v346
  %1293 = vmatpush.bf16.msra.mxu0 %v345
  %1294 = vmatpush.bf16.msra.mxu0 %v344
  %1295 = vmatpush.bf16.msra.mxu0 %v343
  %1296 = vmatpush.bf16.msra.mxu0 %v342
  %1297 = vmatmul.bf16.gmra.mxu0 %v883
  %v1298 = vpop.f32.mrf.mxu0
  %v1299 = vadd.f32 %v1260, %v1298
  %v1300 = vpop.f32.mrf.mxu0
  %v1301 = vadd.f32 %v1262, %v1300
  %1302 = vmatmul.bf16.gmra.mxu0 %v901
  %v1303 = vpop.f32.mrf.mxu0
  %v1304 = vadd.f32 %v1265, %v1303
  %v1305 = vpop.f32.mrf.mxu0
  %v1306 = vadd.f32 %v1267, %v1305
  %1307 = vmatmul.bf16.gmra.mxu0 %v919
  %v1308 = vpop.f32.mrf.mxu0
  %v1309 = vadd.f32 %v1270, %v1308
  %v1310 = vpop.f32.mrf.mxu0
  %v1311 = vadd.f32 %v1272, %v1310
  %1312 = vmatmul.bf16.gmra.mxu0 %v937
  %v1313 = vpop.f32.mrf.mxu0
  %v1314 = vadd.f32 %v1275, %v1313
  %v1315 = vpop.f32.mrf.mxu0
  %v1316 = vadd.f32 %v1277, %v1315
  %1317 = vmatmul.bf16.gmra.mxu0 %v955
  %v1318 = vpop.f32.mrf.mxu0
  %v1319 = vadd.f32 %v1280, %v1318
  %v1320 = vpop.f32.mrf.mxu0
  %v1321 = vadd.f32 %v1282, %v1320
  %1322 = vmatmul.bf16.gmra.mxu0 %v973
  %v1323 = vpop.f32.mrf.mxu0
  %v1324 = vadd.f32 %v1285, %v1323
  %v1325 = vpop.f32.mrf.mxu0
  %v1326 = vadd.f32 %v1287, %v1325
  %1327 = vdwg.mxu0
  %1328 = vmatpush.bf16.msra.mxu0 %v357
  %1329 = vmatpush.bf16.msra.mxu0 %v356
  %1330 = vmatpush.bf16.msra.mxu0 %v355
  %1331 = vmatpush.bf16.msra.mxu0 %v354
  %1332 = vmatpush.bf16.msra.mxu0 %v353
  %1333 = vmatpush.bf16.msra.mxu0 %v352
  %1334 = vmatpush.bf16.msra.mxu0 %v351
  %1335 = vmatpush.bf16.msra.mxu0 %v350
  %1336 = vmatmul.bf16.gmra.mxu0 %v884
  %v1337 = vpop.f32.mrf.mxu0
  %v1338 = vadd.f32 %v1299, %v1337
  %v1339 = vpop.f32.mrf.mxu0
  %v1340 = vadd.f32 %v1301, %v1339
  %1341 = vmatmul.bf16.gmra.mxu0 %v902
  %v1342 = vpop.f32.mrf.mxu0
  %v1343 = vadd.f32 %v1304, %v1342
  %v1344 = vpop.f32.mrf.mxu0
  %v1345 = vadd.f32 %v1306, %v1344
  %1346 = vmatmul.bf16.gmra.mxu0 %v920
  %v1347 = vpop.f32.mrf.mxu0
  %v1348 = vadd.f32 %v1309, %v1347
  %v1349 = vpop.f32.mrf.mxu0
  %v1350 = vadd.f32 %v1311, %v1349
  %1351 = vmatmul.bf16.gmra.mxu0 %v938
  %v1352 = vpop.f32.mrf.mxu0
  %v1353 = vadd.f32 %v1314, %v1352
  %v1354 = vpop.f32.mrf.mxu0
  %v1355 = vadd.f32 %v1316, %v1354
  %1356 = vmatmul.bf16.gmra.mxu0 %v956
  %v1357 = vpop.f32.mrf.mxu0
  %v1358 = vadd.f32 %v1319, %v1357
  %v1359 = vpop.f32.mrf.mxu0
  %v1360 = vadd.f32 %v1321, %v1359
  %1361 = vmatmul.bf16.gmra.mxu0 %v974
  %v1362 = vpop.f32.mrf.mxu0
  %v1363 = vadd.f32 %v1324, %v1362
  %v1364 = vpop.f32.mrf.mxu0
  %v1365 = vadd.f32 %v1326, %v1364
  %1366 = vdwg.mxu0
  %1367 = vmatpush.bf16.msra.mxu0 %v365
  %1368 = vmatpush.bf16.msra.mxu0 %v364
  %1369 = vmatpush.bf16.msra.mxu0 %v363
  %1370 = vmatpush.bf16.msra.mxu0 %v362
  %1371 = vmatpush.bf16.msra.mxu0 %v361
  %1372 = vmatpush.bf16.msra.mxu0 %v360
  %1373 = vmatpush.bf16.msra.mxu0 %v359
  %1374 = vmatpush.bf16.msra.mxu0 %v358
  %1375 = vmatmul.bf16.gmra.mxu0 %v885
  %v1376 = vpop.f32.mrf.mxu0
  %v1377 = vadd.f32 %v1338, %v1376
  %v1378 = vpop.f32.mrf.mxu0
  %v1379 = vadd.f32 %v1340, %v1378
  %1380 = vmatmul.bf16.gmra.mxu0 %v903
  %v1381 = vpop.f32.mrf.mxu0
  %v1382 = vadd.f32 %v1343, %v1381
  %v1383 = vpop.f32.mrf.mxu0
  %v1384 = vadd.f32 %v1345, %v1383
  %1385 = vmatmul.bf16.gmra.mxu0 %v921
  %v1386 = vpop.f32.mrf.mxu0
  %v1387 = vadd.f32 %v1348, %v1386
  %v1388 = vpop.f32.mrf.mxu0
  %v1389 = vadd.f32 %v1350, %v1388
  %1390 = vmatmul.bf16.gmra.mxu0 %v939
  %v1391 = vpop.f32.mrf.mxu0
  %v1392 = vadd.f32 %v1353, %v1391
  %v1393 = vpop.f32.mrf.mxu0
  %v1394 = vadd.f32 %v1355, %v1393
  %1395 = vmatmul.bf16.gmra.mxu0 %v957
  %v1396 = vpop.f32.mrf.mxu0
  %v1397 = vadd.f32 %v1358, %v1396
  %v1398 = vpop.f32.mrf.mxu0
  %v1399 = vadd.f32 %v1360, %v1398
  %1400 = vmatmul.bf16.gmra.mxu0 %v975
  %v1401 = vpop.f32.mrf.mxu0
  %v1402 = vadd.f32 %v1363, %v1401
  %v1403 = vpop.f32.mrf.mxu0
  %v1404 = vadd.f32 %v1365, %v1403
  %1405 = vdwg.mxu0
  %1406 = vmatpush.bf16.msra.mxu0 %v373
  %1407 = vmatpush.bf16.msra.mxu0 %v372
  %1408 = vmatpush.bf16.msra.mxu0 %v371
  %1409 = vmatpush.bf16.msra.mxu0 %v370
  %1410 = vmatpush.bf16.msra.mxu0 %v369
  %1411 = vmatpush.bf16.msra.mxu0 %v368
  %1412 = vmatpush.bf16.msra.mxu0 %v367
  %1413 = vmatpush.bf16.msra.mxu0 %v366
  %1414 = vmatmul.bf16.gmra.mxu0 %v886
  %v1415 = vpop.f32.mrf.mxu0
  %v1416 = vadd.f32 %v1377, %v1415
  %v1417 = vpop.f32.mrf.mxu0
  %v1418 = vadd.f32 %v1379, %v1417
  %1419 = vmatmul.bf16.gmra.mxu0 %v904
  %v1420 = vpop.f32.mrf.mxu0
  %v1421 = vadd.f32 %v1382, %v1420
  %v1422 = vpop.f32.mrf.mxu0
  %v1423 = vadd.f32 %v1384, %v1422
  %1424 = vmatmul.bf16.gmra.mxu0 %v922
  %v1425 = vpop.f32.mrf.mxu0
  %v1426 = vadd.f32 %v1387, %v1425
  %v1427 = vpop.f32.mrf.mxu0
  %v1428 = vadd.f32 %v1389, %v1427
  %1429 = vmatmul.bf16.gmra.mxu0 %v940
  %v1430 = vpop.f32.mrf.mxu0
  %v1431 = vadd.f32 %v1392, %v1430
  %v1432 = vpop.f32.mrf.mxu0
  %v1433 = vadd.f32 %v1394, %v1432
  %1434 = vmatmul.bf16.gmra.mxu0 %v958
  %v1435 = vpop.f32.mrf.mxu0
  %v1436 = vadd.f32 %v1397, %v1435
  %v1437 = vpop.f32.mrf.mxu0
  %v1438 = vadd.f32 %v1399, %v1437
  %1439 = vmatmul.bf16.gmra.mxu0 %v976
  %v1440 = vpop.f32.mrf.mxu0
  %v1441 = vadd.f32 %v1402, %v1440
  %v1442 = vpop.f32.mrf.mxu0
  %v1443 = vadd.f32 %v1404, %v1442
  %1444 = vdwg.mxu0
  %1445 = vmatpush.bf16.msra.mxu0 %v381
  %1446 = vmatpush.bf16.msra.mxu0 %v380
  %1447 = vmatpush.bf16.msra.mxu0 %v379
  %1448 = vmatpush.bf16.msra.mxu0 %v378
  %1449 = vmatpush.bf16.msra.mxu0 %v377
  %1450 = vmatpush.bf16.msra.mxu0 %v376
  %1451 = vmatpush.bf16.msra.mxu0 %v375
  %1452 = vmatpush.bf16.msra.mxu0 %v374
  %1453 = vmatmul.bf16.gmra.mxu0 %v887
  %v1454 = vpop.f32.mrf.mxu0
  %v1455 = vadd.f32 %v1416, %v1454
  %v1456 = vpop.f32.mrf.mxu0
  %v1457 = vadd.f32 %v1418, %v1456
  %1458 = vmatmul.bf16.gmra.mxu0 %v905
  %v1459 = vpop.f32.mrf.mxu0
  %v1460 = vadd.f32 %v1421, %v1459
  %v1461 = vpop.f32.mrf.mxu0
  %v1462 = vadd.f32 %v1423, %v1461
  %1463 = vmatmul.bf16.gmra.mxu0 %v923
  %v1464 = vpop.f32.mrf.mxu0
  %v1465 = vadd.f32 %v1426, %v1464
  %v1466 = vpop.f32.mrf.mxu0
  %v1467 = vadd.f32 %v1428, %v1466
  %1468 = vmatmul.bf16.gmra.mxu0 %v941
  %v1469 = vpop.f32.mrf.mxu0
  %v1470 = vadd.f32 %v1431, %v1469
  %v1471 = vpop.f32.mrf.mxu0
  %v1472 = vadd.f32 %v1433, %v1471
  %1473 = vmatmul.bf16.gmra.mxu0 %v959
  %v1474 = vpop.f32.mrf.mxu0
  %v1475 = vadd.f32 %v1436, %v1474
  %v1476 = vpop.f32.mrf.mxu0
  %v1477 = vadd.f32 %v1438, %v1476
  %1478 = vmatmul.bf16.gmra.mxu0 %v977
  %v1479 = vpop.f32.mrf.mxu0
  %v1480 = vadd.f32 %v1441, %v1479
  %v1481 = vpop.f32.mrf.mxu0
  %v1482 = vadd.f32 %v1443, %v1481
  %1483 = vdwg.mxu0
  %1484 = vmatpush.bf16.msra.mxu0 %v389
  %1485 = vmatpush.bf16.msra.mxu0 %v388
  %1486 = vmatpush.bf16.msra.mxu0 %v387
  %1487 = vmatpush.bf16.msra.mxu0 %v386
  %1488 = vmatpush.bf16.msra.mxu0 %v385
  %1489 = vmatpush.bf16.msra.mxu0 %v384
  %1490 = vmatpush.bf16.msra.mxu0 %v383
  %1491 = vmatpush.bf16.msra.mxu0 %v382
  %1492 = vmatmul.bf16.gmra.mxu0 %v888
  %v1493 = vpop.f32.mrf.mxu0
  %v1494 = vadd.f32 %v1455, %v1493
  %v1495 = vpop.f32.mrf.mxu0
  %v1496 = vadd.f32 %v1457, %v1495
  %1497 = vmatmul.bf16.gmra.mxu0 %v906
  %v1498 = vpop.f32.mrf.mxu0
  %v1499 = vadd.f32 %v1460, %v1498
  %v1500 = vpop.f32.mrf.mxu0
  %v1501 = vadd.f32 %v1462, %v1500
  %1502 = vmatmul.bf16.gmra.mxu0 %v924
  %v1503 = vpop.f32.mrf.mxu0
  %v1504 = vadd.f32 %v1465, %v1503
  %v1505 = vpop.f32.mrf.mxu0
  %v1506 = vadd.f32 %v1467, %v1505
  %1507 = vmatmul.bf16.gmra.mxu0 %v942
  %v1508 = vpop.f32.mrf.mxu0
  %v1509 = vadd.f32 %v1470, %v1508
  %v1510 = vpop.f32.mrf.mxu0
  %v1511 = vadd.f32 %v1472, %v1510
  %1512 = vmatmul.bf16.gmra.mxu0 %v960
  %v1513 = vpop.f32.mrf.mxu0
  %v1514 = vadd.f32 %v1475, %v1513
  %v1515 = vpop.f32.mrf.mxu0
  %v1516 = vadd.f32 %v1477, %v1515
  %1517 = vmatmul.bf16.gmra.mxu0 %v978
  %v1518 = vpop.f32.mrf.mxu0
  %v1519 = vadd.f32 %v1480, %v1518
  %v1520 = vpop.f32.mrf.mxu0
  %v1521 = vadd.f32 %v1482, %v1520
  %1522 = vdwg.mxu0
  %1523 = vmatpush.bf16.msra.mxu0 %v397
  %1524 = vmatpush.bf16.msra.mxu0 %v396
  %1525 = vmatpush.bf16.msra.mxu0 %v395
  %1526 = vmatpush.bf16.msra.mxu0 %v394
  %1527 = vmatpush.bf16.msra.mxu0 %v393
  %1528 = vmatpush.bf16.msra.mxu0 %v392
  %1529 = vmatpush.bf16.msra.mxu0 %v391
  %1530 = vmatpush.bf16.msra.mxu0 %v390
  %1531 = vmatmul.bf16.gmra.mxu0 %v889
  %v1532 = vpop.f32.mrf.mxu0
  %v1533 = vadd.f32 %v1494, %v1532
  %v1534 = vpop.f32.mrf.mxu0
  %v1535 = vadd.f32 %v1496, %v1534
  %1536 = vmatmul.bf16.gmra.mxu0 %v907
  %v1537 = vpop.f32.mrf.mxu0
  %v1538 = vadd.f32 %v1499, %v1537
  %v1539 = vpop.f32.mrf.mxu0
  %v1540 = vadd.f32 %v1501, %v1539
  %1541 = vmatmul.bf16.gmra.mxu0 %v925
  %v1542 = vpop.f32.mrf.mxu0
  %v1543 = vadd.f32 %v1504, %v1542
  %v1544 = vpop.f32.mrf.mxu0
  %v1545 = vadd.f32 %v1506, %v1544
  %1546 = vmatmul.bf16.gmra.mxu0 %v943
  %v1547 = vpop.f32.mrf.mxu0
  %v1548 = vadd.f32 %v1509, %v1547
  %v1549 = vpop.f32.mrf.mxu0
  %v1550 = vadd.f32 %v1511, %v1549
  %1551 = vmatmul.bf16.gmra.mxu0 %v961
  %v1552 = vpop.f32.mrf.mxu0
  %v1553 = vadd.f32 %v1514, %v1552
  %v1554 = vpop.f32.mrf.mxu0
  %v1555 = vadd.f32 %v1516, %v1554
  %1556 = vmatmul.bf16.gmra.mxu0 %v979
  %v1557 = vpop.f32.mrf.mxu0
  %v1558 = vadd.f32 %v1519, %v1557
  %v1559 = vpop.f32.mrf.mxu0
  %v1560 = vadd.f32 %v1521, %v1559
  %1561 = vdwg.mxu0
  %1562 = vmatpush.bf16.msra.mxu0 %v405
  %1563 = vmatpush.bf16.msra.mxu0 %v404
  %1564 = vmatpush.bf16.msra.mxu0 %v403
  %1565 = vmatpush.bf16.msra.mxu0 %v402
  %1566 = vmatpush.bf16.msra.mxu0 %v401
  %1567 = vmatpush.bf16.msra.mxu0 %v400
  %1568 = vmatpush.bf16.msra.mxu0 %v399
  %1569 = vmatpush.bf16.msra.mxu0 %v398
  %1570 = vmatmul.bf16.gmra.mxu0 %v890
  %v1571 = vpop.f32.mrf.mxu0
  %v1572 = vadd.f32 %v1533, %v1571
  %v1573 = vpop.f32.mrf.mxu0
  %v1574 = vadd.f32 %v1535, %v1573
  %1575 = vmatmul.bf16.gmra.mxu0 %v908
  %v1576 = vpop.f32.mrf.mxu0
  %v1577 = vadd.f32 %v1538, %v1576
  %v1578 = vpop.f32.mrf.mxu0
  %v1579 = vadd.f32 %v1540, %v1578
  %1580 = vmatmul.bf16.gmra.mxu0 %v926
  %v1581 = vpop.f32.mrf.mxu0
  %v1582 = vadd.f32 %v1543, %v1581
  %v1583 = vpop.f32.mrf.mxu0
  %v1584 = vadd.f32 %v1545, %v1583
  %1585 = vmatmul.bf16.gmra.mxu0 %v944
  %v1586 = vpop.f32.mrf.mxu0
  %v1587 = vadd.f32 %v1548, %v1586
  %v1588 = vpop.f32.mrf.mxu0
  %v1589 = vadd.f32 %v1550, %v1588
  %1590 = vmatmul.bf16.gmra.mxu0 %v962
  %v1591 = vpop.f32.mrf.mxu0
  %v1592 = vadd.f32 %v1553, %v1591
  %v1593 = vpop.f32.mrf.mxu0
  %v1594 = vadd.f32 %v1555, %v1593
  %1595 = vmatmul.bf16.gmra.mxu0 %v980
  %v1596 = vpop.f32.mrf.mxu0
  %v1597 = vadd.f32 %v1558, %v1596
  %v1598 = vpop.f32.mrf.mxu0
  %v1599 = vadd.f32 %v1560, %v1598
  %1600 = vdwg.mxu0
  %1601 = vmatpush.bf16.msra.mxu0 %v413
  %1602 = vmatpush.bf16.msra.mxu0 %v412
  %1603 = vmatpush.bf16.msra.mxu0 %v411
  %1604 = vmatpush.bf16.msra.mxu0 %v410
  %1605 = vmatpush.bf16.msra.mxu0 %v409
  %1606 = vmatpush.bf16.msra.mxu0 %v408
  %1607 = vmatpush.bf16.msra.mxu0 %v407
  %1608 = vmatpush.bf16.msra.mxu0 %v406
  %1609 = vmatmul.bf16.gmra.mxu0 %v891
  %v1610 = vpop.f32.mrf.mxu0
  %v1611 = vadd.f32 %v1572, %v1610
  %v1612 = vpop.f32.mrf.mxu0
  %v1613 = vadd.f32 %v1574, %v1612
  %1614 = vmatmul.bf16.gmra.mxu0 %v909
  %v1615 = vpop.f32.mrf.mxu0
  %v1616 = vadd.f32 %v1577, %v1615
  %v1617 = vpop.f32.mrf.mxu0
  %v1618 = vadd.f32 %v1579, %v1617
  %1619 = vmatmul.bf16.gmra.mxu0 %v927
  %v1620 = vpop.f32.mrf.mxu0
  %v1621 = vadd.f32 %v1582, %v1620
  %v1622 = vpop.f32.mrf.mxu0
  %v1623 = vadd.f32 %v1584, %v1622
  %1624 = vmatmul.bf16.gmra.mxu0 %v945
  %v1625 = vpop.f32.mrf.mxu0
  %v1626 = vadd.f32 %v1587, %v1625
  %v1627 = vpop.f32.mrf.mxu0
  %v1628 = vadd.f32 %v1589, %v1627
  %1629 = vmatmul.bf16.gmra.mxu0 %v963
  %v1630 = vpop.f32.mrf.mxu0
  %v1631 = vadd.f32 %v1592, %v1630
  %v1632 = vpop.f32.mrf.mxu0
  %v1633 = vadd.f32 %v1594, %v1632
  %1634 = vmatmul.bf16.gmra.mxu0 %v981
  %v1635 = vpop.f32.mrf.mxu0
  %v1636 = vadd.f32 %v1597, %v1635
  %v1637 = vpop.f32.mrf.mxu0
  %v1638 = vadd.f32 %v1599, %v1637
  %1639 = vdwg.mxu0
  %1640 = vmatpush.bf16.msra.mxu0 %v421
  %1641 = vmatpush.bf16.msra.mxu0 %v420
  %1642 = vmatpush.bf16.msra.mxu0 %v419
  %1643 = vmatpush.bf16.msra.mxu0 %v418
  %1644 = vmatpush.bf16.msra.mxu0 %v417
  %1645 = vmatpush.bf16.msra.mxu0 %v416
  %1646 = vmatpush.bf16.msra.mxu0 %v415
  %1647 = vmatpush.bf16.msra.mxu0 %v414
  %1648 = vmatmul.bf16.gmra.mxu0 %v892
  %v1649 = vpop.f32.mrf.mxu0
  %v1650 = vadd.f32 %v1611, %v1649
  %v1651 = vpop.f32.mrf.mxu0
  %v1652 = vadd.f32 %v1613, %v1651
  %1653 = vmatmul.bf16.gmra.mxu0 %v910
  %v1654 = vpop.f32.mrf.mxu0
  %v1655 = vadd.f32 %v1616, %v1654
  %v1656 = vpop.f32.mrf.mxu0
  %v1657 = vadd.f32 %v1618, %v1656
  %1658 = vmatmul.bf16.gmra.mxu0 %v928
  %v1659 = vpop.f32.mrf.mxu0
  %v1660 = vadd.f32 %v1621, %v1659
  %v1661 = vpop.f32.mrf.mxu0
  %v1662 = vadd.f32 %v1623, %v1661
  %1663 = vmatmul.bf16.gmra.mxu0 %v946
  %v1664 = vpop.f32.mrf.mxu0
  %v1665 = vadd.f32 %v1626, %v1664
  %v1666 = vpop.f32.mrf.mxu0
  %v1667 = vadd.f32 %v1628, %v1666
  %1668 = vmatmul.bf16.gmra.mxu0 %v964
  %v1669 = vpop.f32.mrf.mxu0
  %v1670 = vadd.f32 %v1631, %v1669
  %v1671 = vpop.f32.mrf.mxu0
  %v1672 = vadd.f32 %v1633, %v1671
  %1673 = vmatmul.bf16.gmra.mxu0 %v982
  %v1674 = vpop.f32.mrf.mxu0
  %v1675 = vadd.f32 %v1636, %v1674
  %v1676 = vpop.f32.mrf.mxu0
  %v1677 = vadd.f32 %v1638, %v1676
  %1678 = vdwg.mxu0
  %1679 = vmatpush.bf16.msra.mxu0 %v429
  %1680 = vmatpush.bf16.msra.mxu0 %v428
  %1681 = vmatpush.bf16.msra.mxu0 %v427
  %1682 = vmatpush.bf16.msra.mxu0 %v426
  %1683 = vmatpush.bf16.msra.mxu0 %v425
  %1684 = vmatpush.bf16.msra.mxu0 %v424
  %1685 = vmatpush.bf16.msra.mxu0 %v423
  %1686 = vmatpush.bf16.msra.mxu0 %v422
  %1687 = vmatmul.bf16.gmra.mxu0 %v893
  %v1688 = vpop.f32.mrf.mxu0
  %v1689 = vadd.f32 %v1650, %v1688
  %v1690 = vpop.f32.mrf.mxu0
  %v1691 = vadd.f32 %v1652, %v1690
  %1692 = vmatmul.bf16.gmra.mxu0 %v911
  %v1693 = vpop.f32.mrf.mxu0
  %v1694 = vadd.f32 %v1655, %v1693
  %v1695 = vpop.f32.mrf.mxu0
  %v1696 = vadd.f32 %v1657, %v1695
  %1697 = vmatmul.bf16.gmra.mxu0 %v929
  %v1698 = vpop.f32.mrf.mxu0
  %v1699 = vadd.f32 %v1660, %v1698
  %v1700 = vpop.f32.mrf.mxu0
  %v1701 = vadd.f32 %v1662, %v1700
  %1702 = vmatmul.bf16.gmra.mxu0 %v947
  %v1703 = vpop.f32.mrf.mxu0
  %v1704 = vadd.f32 %v1665, %v1703
  %v1705 = vpop.f32.mrf.mxu0
  %v1706 = vadd.f32 %v1667, %v1705
  %1707 = vmatmul.bf16.gmra.mxu0 %v965
  %v1708 = vpop.f32.mrf.mxu0
  %v1709 = vadd.f32 %v1670, %v1708
  %v1710 = vpop.f32.mrf.mxu0
  %v1711 = vadd.f32 %v1672, %v1710
  %1712 = vmatmul.bf16.gmra.mxu0 %v983
  %v1713 = vpop.f32.mrf.mxu0
  %v1714 = vadd.f32 %v1675, %v1713
  %v1715 = vpop.f32.mrf.mxu0
  %v1716 = vadd.f32 %v1677, %v1715
  %1717 = vdwg.mxu0
  %1718 = vmatpush.bf16.msra.mxu0 %v437
  %1719 = vmatpush.bf16.msra.mxu0 %v436
  %1720 = vmatpush.bf16.msra.mxu0 %v435
  %1721 = vmatpush.bf16.msra.mxu0 %v434
  %1722 = vmatpush.bf16.msra.mxu0 %v433
  %1723 = vmatpush.bf16.msra.mxu0 %v432
  %1724 = vmatpush.bf16.msra.mxu0 %v431
  %1725 = vmatpush.bf16.msra.mxu0 %v430
  %1726 = vmatmul.bf16.gmra.mxu0 %v894
  %v1727 = vpop.f32.mrf.mxu0
  %v1728 = vadd.f32 %v1689, %v1727
  %v1729 = vpop.f32.mrf.mxu0
  %v1730 = vadd.f32 %v1691, %v1729
  %1731 = vmatmul.bf16.gmra.mxu0 %v912
  %v1732 = vpop.f32.mrf.mxu0
  %v1733 = vadd.f32 %v1694, %v1732
  %v1734 = vpop.f32.mrf.mxu0
  %v1735 = vadd.f32 %v1696, %v1734
  %1736 = vmatmul.bf16.gmra.mxu0 %v930
  %v1737 = vpop.f32.mrf.mxu0
  %v1738 = vadd.f32 %v1699, %v1737
  %v1739 = vpop.f32.mrf.mxu0
  %v1740 = vadd.f32 %v1701, %v1739
  %1741 = vmatmul.bf16.gmra.mxu0 %v948
  %v1742 = vpop.f32.mrf.mxu0
  %v1743 = vadd.f32 %v1704, %v1742
  %v1744 = vpop.f32.mrf.mxu0
  %v1745 = vadd.f32 %v1706, %v1744
  %1746 = vmatmul.bf16.gmra.mxu0 %v966
  %v1747 = vpop.f32.mrf.mxu0
  %v1748 = vadd.f32 %v1709, %v1747
  %v1749 = vpop.f32.mrf.mxu0
  %v1750 = vadd.f32 %v1711, %v1749
  %1751 = vmatmul.bf16.gmra.mxu0 %v984
  %v1752 = vpop.f32.mrf.mxu0
  %v1753 = vadd.f32 %v1714, %v1752
  %v1754 = vpop.f32.mrf.mxu0
  %v1755 = vadd.f32 %v1716, %v1754
  %1756 = vdwg.mxu0
  %1757 = vmatpush.bf16.msra.mxu0 %v445
  %1758 = vmatpush.bf16.msra.mxu0 %v444
  %1759 = vmatpush.bf16.msra.mxu0 %v443
  %1760 = vmatpush.bf16.msra.mxu0 %v442
  %1761 = vmatpush.bf16.msra.mxu0 %v441
  %1762 = vmatpush.bf16.msra.mxu0 %v440
  %1763 = vmatpush.bf16.msra.mxu0 %v439
  %1764 = vmatpush.bf16.msra.mxu0 %v438
  %1765 = vmatmul.bf16.gmra.mxu0 %v895
  %v1766 = vpop.f32.mrf.mxu0
  %v1767 = vadd.f32 %v1728, %v1766
  %v1768 = vpop.f32.mrf.mxu0
  %v1769 = vadd.f32 %v1730, %v1768
  %1770 = vmatmul.bf16.gmra.mxu0 %v913
  %v1771 = vpop.f32.mrf.mxu0
  %v1772 = vadd.f32 %v1733, %v1771
  %v1773 = vpop.f32.mrf.mxu0
  %v1774 = vadd.f32 %v1735, %v1773
  %1775 = vmatmul.bf16.gmra.mxu0 %v931
  %v1776 = vpop.f32.mrf.mxu0
  %v1777 = vadd.f32 %v1738, %v1776
  %v1778 = vpop.f32.mrf.mxu0
  %v1779 = vadd.f32 %v1740, %v1778
  %1780 = vmatmul.bf16.gmra.mxu0 %v949
  %v1781 = vpop.f32.mrf.mxu0
  %v1782 = vadd.f32 %v1743, %v1781
  %v1783 = vpop.f32.mrf.mxu0
  %v1784 = vadd.f32 %v1745, %v1783
  %1785 = vmatmul.bf16.gmra.mxu0 %v967
  %v1786 = vpop.f32.mrf.mxu0
  %v1787 = vadd.f32 %v1748, %v1786
  %v1788 = vpop.f32.mrf.mxu0
  %v1789 = vadd.f32 %v1750, %v1788
  %1790 = vmatmul.bf16.gmra.mxu0 %v985
  %v1791 = vpop.f32.mrf.mxu0
  %v1792 = vadd.f32 %v1753, %v1791
  %v1793 = vpop.f32.mrf.mxu0
  %v1794 = vadd.f32 %v1755, %v1793
  %1795 = vdwg.mxu0
  %vm1796 = vcmask 400384
  %v1797 = vsel %vm1796, %v1767, 0.0
  %1798 = vadd.xlane.f32.xlu0 %v1797
  %v1799 = vpop.xlane.xlu0 %1798
  %v1800 = vsel %vm1796, %v1769, 0.0
  %1801 = vadd.xlane.f32.xlu0 %v1800
  %v1802 = vpop.xlane.xlu0 %1801
  %v1803 = vsel %vm1796, %v1772, 0.0
  %1804 = vadd.xlane.f32.xlu0 %v1803
  %v1805 = vpop.xlane.xlu0 %1804
  %v1806 = vsel %vm1796, %v1774, 0.0
  %1807 = vadd.xlane.f32.xlu0 %v1806
  %v1808 = vpop.xlane.xlu0 %1807
  %v1809 = vsel %vm1796, %v1777, 0.0
  %1810 = vadd.xlane.f32.xlu0 %v1809
  %v1811 = vpop.xlane.xlu0 %1810
  %v1812 = vsel %vm1796, %v1779, 0.0
  %1813 = vadd.xlane.f32.xlu0 %v1812
  %v1814 = vpop.xlane.xlu0 %1813
  %v1815 = vsel %vm1796, %v1782, 0.0
  %1816 = vadd.xlane.f32.xlu0 %v1815
  %v1817 = vpop.xlane.xlu0 %1816
  %v1818 = vsel %vm1796, %v1784, 0.0
  %1819 = vadd.xlane.f32.xlu0 %v1818
  %v1820 = vpop.xlane.xlu0 %1819
  %v1821 = vsel %vm1796, %v1787, 0.0
  %1822 = vadd.xlane.f32.xlu0 %v1821
  %v1823 = vpop.xlane.xlu0 %1822
  %v1824 = vsel %vm1796, %v1789, 0.0
  %1825 = vadd.xlane.f32.xlu0 %v1824
  %v1826 = vpop.xlane.xlu0 %1825
  %v1827 = vsel %vm1796, %v1792, 0.0
  %1828 = vadd.xlane.f32.xlu0 %v1827
  %v1829 = vpop.xlane.xlu0 %1828
  %v1830 = vsel %vm1796, %v1794, 0.0
  %1831 = vadd.xlane.f32.xlu0 %v1830
  %v1832 = vpop.xlane.xlu0 %1831
  %v1833 = vmul.f32 %v1799, 0.020408163
  %v1834 = vmul.f32 %v1802, 0.020408163
  %v1835 = vmul.f32 %v1805, 0.020408163
  %v1836 = vmul.f32 %v1808, 0.020408163
  %v1837 = vmul.f32 %v1811, 0.020408163
  %v1838 = vmul.f32 %v1814, 0.020408163
  %v1839 = vmul.f32 %v1817, 0.020408163
  %v1840 = vmul.f32 %v1820, 0.020408163
  %v1841 = vmul.f32 %v1823, 0.020408163
  %v1842 = vmul.f32 %v1826, 0.020408163
  %v1843 = vmul.f32 %v1829, 0.020408163
  %v1844 = vmul.f32 %v1832, 0.020408163
  %v1845 = vld [vmem:[%s2] sm:$0xff]
  %v1846 = vld [vmem:[%s2 + $0x8] sm:$0xff]
  %v1847 = vld [vmem:[%s2 + $0x10] sm:$0xff]
  %v1848 = vld [vmem:[%s2 + $0x18] sm:$0xff]
  %v1849 = vld [vmem:[%s2 + $0x20] sm:$0xff]
  %v1850 = vld [vmem:[%s2 + $0x28] sm:$0xff]
  %v1851 = vld [vmem:[%s2 + $0x30] sm:$0xff]
  %v1852 = vld [vmem:[%s2 + $0x38] sm:$0xff]
  %v1853 = vld [vmem:[%s2 + $0x40] sm:$0xff]
  %v1854 = vld [vmem:[%s2 + $0x48] sm:$0xff]
  %v1855 = vld [vmem:[%s2 + $0x50] sm:$0xff]
  %v1856 = vld [vmem:[%s2 + $0x58] sm:$0xff]
  %v1857 = vadd.f32 %v1833, %v1845
  %v1858 = vadd.f32 %v1834, %v1846
  %v1859 = vadd.f32 %v1835, %v1847
  %v1860 = vadd.f32 %v1836, %v1848
  %v1861 = vadd.f32 %v1837, %v1849
  %v1862 = vadd.f32 %v1838, %v1850
  %v1863 = vadd.f32 %v1839, %v1851
  %v1864 = vadd.f32 %v1840, %v1852
  %v1865 = vadd.f32 %v1841, %v1853
  %v1866 = vadd.f32 %v1842, %v1854
  %v1867 = vadd.f32 %v1843, %v1855
  %v1868 = vadd.f32 %v1844, %v1856
  %vm1869 = vcmask 7168
  %1870 = vst.msk [vmem:[%s3] sm:$0xff] %vm1869, %v1857
  %1871 = vst.msk [vmem:[%s3 + $0x8] sm:$0xff] %vm1869, %v1858
  %1872 = vst.msk [vmem:[%s3 + $0x10] sm:$0xff] %vm1869, %v1859
  %1873 = vst.msk [vmem:[%s3 + $0x18] sm:$0xff] %vm1869, %v1860
  %1874 = vst.msk [vmem:[%s3 + $0x20] sm:$0xff] %vm1869, %v1861
  %1875 = vst.msk [vmem:[%s3 + $0x28] sm:$0xff] %vm1869, %v1862
  %1876 = vst.msk [vmem:[%s3 + $0x30] sm:$0xff] %vm1869, %v1863
  %1877 = vst.msk [vmem:[%s3 + $0x38] sm:$0xff] %vm1869, %v1864
  %1878 = vst.msk [vmem:[%s3 + $0x40] sm:$0xff] %vm1869, %v1865
  %1879 = vst.msk [vmem:[%s3 + $0x48] sm:$0xff] %vm1869, %v1866
  %1880 = vst.msk [vmem:[%s3 + $0x50] sm:$0xff] %vm1869, %v1867
  %1881 = vst.msk [vmem:[%s3 + $0x58] sm:$0xff] %vm1869, %v1868
  // Predicated region
  $region14: #{tpu_custom_call.1} parent=0 // pred_check
    _
  $region15: #{tpu_custom_call.1} parent=0 // pred_check_branch
    %1883 = sbr.rel (0) target = $region17
  $region16: #{tpu_custom_call.1} parent=0 // pred_region
    _
  $region17: #{tpu_custom_call.1} parent=0 // pred_fallthru
    _
  // Predicated region
  $region18: #{tpu_custom_call.1} parent=0 // pred_check
    _
  $region19: #{tpu_custom_call.1} parent=0 // pred_check_branch
    %1885 = sbr.rel (0) target = $region21
  $region20: #{tpu_custom_call.1} parent=0 // pred_region
    _
  $region21: #{tpu_custom_call.1} parent=0 // pred_fallthru
    _

</llo_original>
